<compile_context>
chip_gen: v7x
topology: tpu7x:2x2x1
jax: 0.10.0
libtpu: 0.0.40
codegen_flags: <defaults>
</compile_context>

<pallas_src>
import math
import functools

import jax
import jax.numpy as jnp
from jax import lax
from jax.experimental import pallas as pl
from jax.experimental.pallas import tpu as pltpu

EPS_GN = 1e-5        # nn.GroupNorm default eps
EPS_INV_SIG = 1e-5   # deformable-DETR inverse_sigmoid eps


def _round_up(x, m):
    return ((x + m - 1) // m) * m


@functools.lru_cache(maxsize=1)
def _vmem_capacity_bytes(default=64 << 20):
    """Per-TensorCore VMEM capacity; conservative (v7x) default on failure."""
    try:
        info = pltpu.get_tpu_info()
        for name in ("vmem_capacity_bytes", "vmem_bytes", "vmem_size_bytes"):
            v = getattr(info, name, None)
            if isinstance(v, int) and v > 0:
                return int(v)
    except Exception:
        pass
    return default


@functools.lru_cache(maxsize=1)
def _generation_defaults():
    """(hw_tile_target, vmem_limit_cap) for this TPU generation."""
    cap = _vmem_capacity_bytes()
    if cap >= (100 << 20):          # v5e / v6e: 128 MiB VMEM per TensorCore
        return 1024, 96 << 20
    return 512, 48 << 20            # v7x: 64 MiB per TensorCore


# -----------------------------------------------------------------------------
# input_proj level = 1x1 Conv2d (as matmul) + GroupNorm(32, D)
#
# Pass A: grid = (N, T); axis 0 "parallel", axis 1 "arbitrary" (stat reduction).
#   Outputs: unnormalized y (bf16) + per-channel sum / sumsq (resident blocks).
# Pass B: grid = (N, T); pure elementwise normalize, bf16 in / bf16 out.
# -----------------------------------------------------------------------------
def _proj_stats_kernel(x_ref, w_ref, b_ref, y_ref, sum_ref, sq_ref,
                       *, hw_total, hw_tile, masked):
    t = pl.program_id(1)

    # 1x1 conv as (hw_tile, Cin) @ (Cin, D): bf16 operands, f32 accumulation.
    y = jnp.dot(x_ref[0], w_ref[...],
                preferred_element_type=jnp.float32) + b_ref[...]

    # Unnormalized activations to HBM in bf16; the normalize pass reads these
    # back instead of re-reading x / re-running the matmul.
    y_ref[0] = y.astype(y_ref.dtype)

    @pl.when(t == 0)
    def _init():
        sum_ref[...] = jnp.zeros_like(sum_ref)
        sq_ref[...] = jnp.zeros_like(sq_ref)

    ym = y
    if masked:
        # Boundary/pad rows hold y == bias (or garbage), NOT 0 -> mask them out
        # of the GroupNorm statistics.
        rows = t * hw_tile + lax.broadcasted_iota(jnp.int32, y.shape, 0)
        ym = jnp.where(rows < hw_total, y, 0.0)

    # E[x^2]-E[x]^2 in f32, clamped later; fine at these scales.
    # TODO(synk): switch to mean-shifted / Welford accumulation if validation
    # drifts at production activation magnitudes.
    sum_ref[0] += jnp.sum(ym, axis=0, keepdims=True)
    sq_ref[0] += jnp.sum(ym * ym, axis=0, keepdims=True)


def _gn_norm_kernel(y_ref, mean_ref, istd_ref, gamma_ref, beta_ref, o_ref):
    y = y_ref[0].astype(jnp.float32)
    o_ref[0] = ((y - mean_ref[0]) * istd_ref[0] * gamma_ref[...]
                + beta_ref[...]).astype(o_ref.dtype)


def input_proj_level(x_flat, w, b, gamma, beta, *, groups=32,
                     hw_tile_target=None, out_dtype=jnp.bfloat16):
    """x_flat: (N, HW, Cin) -> (N, HW, D) bf16; matmul bf16, GroupNorm math f32."""
    N, HW, Cin = x_flat.shape
    D = w.shape[1]

    gen_tile, vmem_cap = _generation_defaults()
    if hw_tile_target is None:
        hw_tile_target = gen_tile

    hw_tile = min(hw_tile_target, _round_up(HW, 8))
    T = pl.cdiv(HW, hw_tile)
    masked = (HW % hw_tile) != 0

    x_bf = x_flat.astype(jnp.bfloat16)     # halves HBM read of the big operand
    w_bf = w.astype(jnp.bfloat16)

    const2 = lambda n, t: (0, 0)

    # explicit VMEM budget (generation-dependent cap; v7x has 64 MiB / TC)
    est_a = (2 * hw_tile * Cin * 2      # x tile (bf16), double buffered
             + 2 * hw_tile * D * 2      # y tile (bf16), double buffered
             + Cin * D * 2              # weight (bf16)
             + 8 * D * 4                # stat / bias blocks
             + (1 << 20))
    vmem_a = int(min(max(2 * est_a, 16 << 20), vmem_cap))

    # TODO(synk): for N=1 inference on v7x, add a group-aligned channel-split
    # parallel grid axis so the second TensorCore is not idle.
    kernel_a = functools.partial(_proj_stats_kernel, hw_total=HW,
                                 hw_tile=hw_tile, masked=masked)
    y_un, sums, sqs = pl.pallas_call(
        kernel_a,
        out_shape=(jax.ShapeDtypeStruct((N, HW, D), jnp.bfloat16),
                   jax.ShapeDtypeStruct((N, 1, D), jnp.float32),
                   jax.ShapeDtypeStruct((N, 1, D), jnp.float32)),
        grid=(N, T),
        in_specs=[
            pl.BlockSpec((1, hw_tile, Cin), lambda n, t: (n, t, 0)),
            pl.BlockSpec((Cin, D), const2),
            pl.BlockSpec((1, D), const2),
        ],
        out_specs=(
            pl.BlockSpec((1, hw_tile, D), lambda n, t: (n, t, 0)),
            pl.BlockSpec((1, 1, D), lambda n, t: (n, 0, 0)),
            pl.BlockSpec((1, 1, D), lambda n, t: (n, 0, 0)),
        ),
        compiler_params=pltpu.CompilerParams(
            dimension_semantics=("parallel", "arbitrary"),
            vmem_limit_bytes=vmem_a),
    )(x_bf, w_bf, b)

    # Tiny per-(batch, group) finalize on (N, G) data -- negligible vs HW*D.
    cg = D // groups
    cnt = jnp.float32(HW * cg)
    gsum = sums.reshape(N, groups, cg).sum(axis=-1)
    gsq = sqs.reshape(N, groups, cg).sum(axis=-1)
    gmean = gsum / cnt
    gvar = jnp.maximum(gsq / cnt - gmean * gmean, 0.0)      # clamp cancellation
    ginv = lax.rsqrt(gvar + EPS_GN)
    mean_c = jnp.repeat(gmean, cg, axis=1).reshape(N, 1, D)
    istd_c = jnp.repeat(ginv, cg, axis=1).reshape(N, 1, D)

    est_b = 4 * hw_tile * D * 2 + (1 << 20)
    vmem_b = int(min(max(2 * est_b, 16 << 20), vmem_cap))

    out = pl.pallas_call(
        _gn_norm_kernel,
        out_shape=jax.ShapeDtypeStruct((N, HW, D), out_dtype),
        grid=(N, T),
        in_specs=[
            pl.BlockSpec((1, hw_tile, D), lambda n, t: (n, t, 0)),
            pl.BlockSpec((1, 1, D), lambda n, t: (n, 0, 0)),
            pl.BlockSpec((1, 1, D), lambda n, t: (n, 0, 0)),
            pl.BlockSpec((1, D), const2),
            pl.BlockSpec((1, D), const2),
        ],
        out_specs=pl.BlockSpec((1, hw_tile, D), lambda n, t: (n, t, 0)),
        compiler_params=pltpu.CompilerParams(
            dimension_semantics=("parallel", "parallel"),
            vmem_limit_bytes=vmem_b),
    )(y_un, mean_c, istd_c, gamma, beta)

    return out


# -----------------------------------------------------------------------------
# Shared detection heads over all (layer, batch, query) rows.
# -----------------------------------------------------------------------------
def _head_kernel(h_ref, r_ref, wcat_ref, bcat_ref, w2_ref, b2_ref,
                 w3_ref, b3_ref, logit_ref, box_ref, *, c_pad):
    h = h_ref[...]                                            # (tm, D) bf16

    # fused [class head (lanes 0..c_pad) | bbox MLP layer-1] matmul, f32 acc
    y = jnp.dot(h, wcat_ref[...],
                preferred_element_type=jnp.float32) + bcat_ref[...]
    logit_ref[...] = y[:, :c_pad]                             # aligned, lane-dense
    x = jnp.maximum(y[:, c_pad:], 0.0)                        # bbox layer 1 + ReLU

    x = jnp.maximum(jnp.dot(x.astype(jnp.bfloat16), w2_ref[...],
                            preferred_element_type=jnp.float32) + b2_ref[...],
                    0.0)
    tmp = jnp.dot(x.astype(jnp.bfloat16), w3_ref[...],
                  preferred_element_type=jnp.float32) + b3_ref[...]   # (tm, 128)

    # inverse_sigmoid(reference), eps = 1e-5; pad lanes hold 0.5 -> inv == 0,
    # so tmp[..., :2] += inv is a plain full-width VPU add (no concat/rotate).
    rc = jnp.clip(r_ref[...], 0.0, 1.0)
    inv = jnp.log(jnp.maximum(rc, EPS_INV_SIG) / jnp.maximum(1.0 - rc, EPS_INV_SIG))
    box_ref[...] = jax.nn.sigmoid(tmp + inv)                  # aligned, lane-dense


def pack_head_params(wc, bc, w1, b1, w2, b2, w3, b3):
    """Fuse / pad head weights once (hoisted out of the per-call wrapper)."""
    D = w1.shape[0]
    C = wc.shape[1]
    c_pad = _round_up(C, 128)
    wcat = jnp.zeros((D, c_pad + D), jnp.float32)
    wcat = wcat.at[:, :C].set(wc).at[:, c_pad:].set(w1)
    bcat = jnp.zeros((1, c_pad + D), jnp.float32)
    bcat = bcat.at[:, :C].set(bc).at[:, c_pad:].set(b1)
    w3p = jnp.zeros((D, 128), jnp.float32).at[:, :4].set(w3)
    b3p = jnp.zeros((1, 128), jnp.float32).at[:, :4].set(b3)
    return dict(wcat=wcat.astype(jnp.bfloat16), bcat=bcat,
                w2=w2.astype(jnp.bfloat16), b2=b2,
                w3=w3p.astype(jnp.bfloat16), b3=b3p,
                c_pad=c_pad, num_classes=C, hidden_dim=D)


def detection_heads(hs, refs, head, *, tm_target=512):
    """hs: (L, B, Q, D); refs: (L, B, Q, 2) -> ((L,B,Q,C), (L,B,Q,4))."""
    L, B, Q, D = hs.shape
    C = head["num_classes"]
    c_pad = head["c_pad"]
    M = L * B * Q

    h2 = hs.reshape(M, D).astype(jnp.bfloat16)
    # pad reference to 128 lanes with 0.5 so inverse_sigmoid(pad) == 0
    r2 = jnp.pad(refs.reshape(M, 2).astype(jnp.float32),
                 ((0, 0), (0, 126)), constant_values=0.5)

    tm = min(tm_target, _round_up(M, 8))
    grid_m = pl.cdiv(M, tm)
    wcat, bcat = head["wcat"], head["bcat"]
    Wcat = wcat.shape[1]

    const = lambda m: (0, 0)
    kernel = functools.partial(_head_kernel, c_pad=c_pad)
    logits, boxes = pl.pallas_call(
        kernel,
        out_shape=(jax.ShapeDtypeStruct((M, c_pad), jnp.float32),
                   jax.ShapeDtypeStruct((M, 128), jnp.float32)),
        grid=(grid_m,),
        in_specs=[
            pl.BlockSpec((tm, D), lambda m: (m, 0)),
            pl.BlockSpec((tm, 128), lambda m: (m, 0)),
            pl.BlockSpec((D, Wcat), const),
            pl.BlockSpec((1, Wcat), const),
            pl.BlockSpec((D, D), const),
            pl.BlockSpec((1, D), const),
            pl.BlockSpec((D, 128), const),
            pl.BlockSpec((1, 128), const),
        ],
        out_specs=(pl.BlockSpec((tm, c_pad), lambda m: (m, 0)),
                   pl.BlockSpec((tm, 128), lambda m: (m, 0))),
        compiler_params=pltpu.CompilerParams(dimension_semantics=("parallel",)),
    )(h2, r2, wcat, bcat, head["w2"], head["b2"], head["w3"], head["b3"])

    logits = logits[:, :C].reshape(L, B, Q, C)
    boxes = boxes[:, :4].reshape(L, B, Q, 4)
    return logits, boxes


# -----------------------------------------------------------------------------
# Deterministic parameter construction (mirrors DeformableDETR.__init__)
# -----------------------------------------------------------------------------
def make_params(key, hidden_dim, cls_out_channels, backbone_channels):
    keys = jax.random.split(key, 16)
    params = {}

    # input_proj: per level a 1x1 conv (xavier_uniform, bias=0) + GroupNorm(32, D)
    params["input_proj"] = []
    for i, cin in enumerate(backbone_channels):
        bound = math.sqrt(6.0 / (cin + hidden_dim))  # xavier_uniform, gain=1
        w = jax.random.uniform(keys[i], (cin, hidden_dim), jnp.float32, -bound, bound)
        b = jnp.zeros((1, hidden_dim), jnp.float32)
        gamma = jnp.ones((1, hidden_dim), jnp.float32)
        beta = jnp.zeros((1, hidden_dim), jnp.float32)
        params["input_proj"].append((w, b, gamma, beta))

    # class_embed: Linear(D -> C); bias = -log((1-p)/p), p = 0.01
    prior_prob = 0.01
    bias_value = -math.log((1.0 - prior_prob) / prior_prob)
    lim = 1.0 / math.sqrt(hidden_dim)
    params["wc"] = jax.random.uniform(keys[8], (hidden_dim, cls_out_channels),
                                      jnp.float32, -lim, lim)
    params["bc"] = jnp.full((1, cls_out_channels), bias_value, jnp.float32)

    # bbox_embed: MLP(D, D, 4, 3); last layer weight=0, bias=[0,0,-2,-2]
    params["w1"] = jax.random.uniform(keys[9], (hidden_dim, hidden_dim), jnp.float32, -lim, lim)
    params["b1"] = jax.random.uniform(keys[10], (1, hidden_dim), jnp.float32, -lim, lim)
    params["w2"] = jax.random.uniform(keys[11], (hidden_dim, hidden_dim), jnp.float32, -lim, lim)
    params["b2"] = jax.random.uniform(keys[12], (1, hidden_dim), jnp.float32, -lim, lim)
    params["w3"] = jnp.zeros((hidden_dim, 4), jnp.float32)
    params["b3"] = jnp.array([[0.0, 0.0, -2.0, -2.0]], jnp.float32)

    # fused / padded head weights built once
    params["head"] = pack_head_params(params["wc"], params["bc"],
                                      params["w1"], params["b1"],
                                      params["w2"], params["b2"],
                                      params["w3"], params["b3"])
    return params


# -----------------------------------------------------------------------------
# Forward pass (glue in plain JAX, hot paths in Pallas)
# -----------------------------------------------------------------------------
def deformable_detr_forward(features_nhwc, hs, init_reference, inter_references,
                            params, aux_loss=True):
    # TODO(synk): backbone (ResNet + positional encoding) and the deformable
    # transformer are external modules; the backbone is assumed to emit
    # channels-last (N, H, W, C) features so no NCHW->NHWC transpose (an extra
    # HBM round trip) is needed here.
    srcs = []
    for feat, (w, b, gamma, beta) in zip(features_nhwc, params["input_proj"]):
        N, H, Wd, C = feat.shape
        x_flat = feat.reshape(N, H * Wd, C)            # free reshape, no transpose
        srcs.append(input_proj_level(x_flat, w, b, gamma, beta))

    # per-level references (non-two-stage, no box refine): shared heads
    L = hs.shape[0]
    refs = jnp.concatenate([init_reference[None], inter_references[:L - 1]], axis=0)

    outputs_class, outputs_coord = detection_heads(hs, refs, params["head"])

    out = {"pred_logits": outputs_class[-1], "pred_boxes": outputs_coord[-1]}
    if aux_loss:
        out["aux_outputs"] = [
            {"pred_logits": a, "pred_boxes": c}
            for a, c in zip(outputs_class[:-1], outputs_coord[:-1])
        ]
    return out, srcs


# -----------------------------------------------------------------------------
# Pure-JAX references (same bf16-quantized matmul inputs) for validation
# -----------------------------------------------------------------------------
def _input_proj_ref(x_flat, w, b, gamma, beta, groups=32):
    hi = jax.lax.Precision.HIGHEST
    x = x_flat.astype(jnp.bfloat16).astype(jnp.float32)
    wf = w.astype(jnp.bfloat16).astype(jnp.float32)
    y = jnp.einsum("nhc,cd->nhd", x, wf, precision=hi) + b
    N, HW, D = y.shape
    yg = y.reshape(N, HW, groups, D // groups)
    mean = yg.mean(axis=(1, 3), keepdims=True)
    var = jnp.maximum((yg * yg).mean(axis=(1, 3), keepdims=True) - mean * mean, 0.0)
    yn = ((yg - mean) * jax.lax.rsqrt(var + EPS_GN)).reshape(N, HW, D)
    return yn * gamma + beta


def _heads_ref(hs, refs, params):
    hi = jax.lax.Precision.HIGHEST
    q = lambda a: a.astype(jnp.bfloat16).astype(jnp.float32)
    h = q(hs)
    logits = jnp.dot(h, q(params["wc"]), precision=hi) + params["bc"]
    x = jax.nn.relu(jnp.dot(h, q(params["w1"]), precision=hi) + params["b1"])
    x = jax.nn.relu(jnp.dot(q(x), q(params["w2"]), precision=hi) + params["b2"])
    tmp = jnp.dot(q(x), q(params["w3"]), precision=hi) + params["b3"]
    rc = jnp.clip(refs, 0.0, 1.0)
    inv = jnp.log(jnp.maximum(rc, EPS_INV_SIG) / jnp.maximum(1.0 - rc, EPS_INV_SIG))
    tmp = tmp.at[..., :2].add(inv)
    return logits, jax.nn.sigmoid(tmp)


if __name__ == "__main__":
    key = jax.random.PRNGKey(0)
    k_feat, k_hs, k_ref0, k_refi, k_par = jax.random.split(key, 5)

    # Small, module-consistent shapes
    B = 2
    hidden_dim = 32             # transformer.d_model (divisible by 32 for GroupNorm)
    num_queries = 8
    cls_out_channels = 16
    num_dec_layers = 3
    backbone_channels = [8, 16, 32]
    spatial = [40, 16, 8]       # HW = 1600/256/64; level 0 exercises multi-tile + masking

    # TODO(synk): backbone (ResNet + positional encoding) and the deformable
    # transformer are external modules; their outputs are synthesized here
    # (channels-last bf16 feature maps, f32 decoder states/references).
    fkeys = jax.random.split(k_feat, len(backbone_channels))
    features = [
        jax.random.normal(fk, (B, s, s, c), jnp.float32).astype(jnp.bfloat16)
        for fk, c, s in zip(fkeys, backbone_channels, spatial)
    ]
    hs = jax.random.normal(k_hs, (num_dec_layers, B, num_queries, hidden_dim), jnp.float32)
    init_reference = jax.nn.sigmoid(
        jax.random.normal(k_ref0, (B, num_queries, 2), jnp.float32))
    inter_references = jax.nn.sigmoid(
        jax.random.normal(k_refi, (num_dec_layers, B, num_queries, 2), jnp.float32))

    params = make_params(k_par, hidden_dim, cls_out_channels, backbone_channels)

    out, srcs = deformable_detr_forward(features, hs, init_reference,
                                        inter_references, params)

    jax.block_until_ready(out["pred_logits"])
    jax.block_until_ready(out["pred_boxes"])
    for aux in out["aux_outputs"]:
        jax.block_until_ready(aux["pred_logits"])
        jax.block_until_ready(aux["pred_boxes"])
    for s in srcs:
        jax.block_until_ready(s)

    # shape checks
    assert out["pred_logits"].shape == (B, num_queries, cls_out_channels)
    assert out["pred_boxes"].shape == (B, num_queries, 4)
    assert len(out["aux_outputs"]) == num_dec_layers - 1
    for s, c, sp in zip(srcs, backbone_channels, spatial):
        assert s.shape == (B, sp * sp, hidden_dim)

    # numeric checks against pure-JAX references
    for feat, s, (w, b, gamma, beta) in zip(features, srcs, params["input_proj"]):
        N, H, Wd, C = feat.shape
        ref = _input_proj_ref(feat.reshape(N, H * Wd, C), w, b, gamma, beta)
        # kernel output is bf16; allow ~1 bf16 ulp on O(1) normalized values
        assert jnp.allclose(s.astype(jnp.float32), ref, atol=3e-2, rtol=3e-2)

    refs = jnp.concatenate([init_reference[None],
                            inter_references[:num_dec_layers - 1]], axis=0)
    ref_logits, ref_boxes = _heads_ref(hs, refs, params)
    assert jnp.allclose(out["pred_logits"], ref_logits[-1], atol=1e-2, rtol=1e-2)
    assert jnp.allclose(out["pred_boxes"], ref_boxes[-1], atol=1e-2, rtol=1e-2)

    print("KERNEL_OK")
</pallas_src>

<mosaic_0001>
module attributes {stable_mosaic.version = 11 : i64} {
  func.func @_proj_stats_kernel(%arg0: i32, %arg1: i32, %arg2: memref<1x512x8xbf16, #tpu.memory_space<vmem>>, %arg3: memref<8x32xbf16, #tpu.memory_space<vmem>>, %arg4: memref<1x32xf32, #tpu.memory_space<vmem>>, %arg5: memref<1x512x32xbf16, #tpu.memory_space<vmem>>, %arg6: memref<1x1x32xf32, #tpu.memory_space<vmem>>, %arg7: memref<1x1x32xf32, #tpu.memory_space<vmem>>) attributes {dimension_semantics = [#tpu.dimension_semantics<parallel>, #tpu.dimension_semantics<arbitrary>], iteration_bounds = array<i64: 2, 4>, scalar_prefetch = 0 : i64, scratch_operands = 0 : i64, tpu.core_type = #tpu.core_type<tc>, window_params = [{transform_indices = @transform_0, window_bounds = array<i64: 1, 512, 8>}, {pipeline_mode = #tpu.pipeline_mode<synchronous>, transform_indices = @transform_1, window_bounds = array<i64: 8, 32>}, {pipeline_mode = #tpu.pipeline_mode<synchronous>, transform_indices = @transform_2, window_bounds = array<i64: 1, 32>}, {transform_indices = @transform_3, window_bounds = array<i64: 1, 512, 32>}, {transform_indices = @transform_4, window_bounds = array<i64: 1, 1, 32>}, {transform_indices = @transform_5, window_bounds = array<i64: 1, 1, 32>}]} {
    %c0 = arith.constant 0 : index
    %c0_0 = arith.constant 0 : index
    %c0_1 = arith.constant 0 : index
    %0 = vector.load %arg2[%c0, %c0_0, %c0_1] : memref<1x512x8xbf16, #tpu.memory_space<vmem>>, vector<1x512x8xbf16>
    %1 = vector.shape_cast %0 : vector<1x512x8xbf16> to vector<512x8xbf16>
    %c0_2 = arith.constant 0 : index
    %c0_3 = arith.constant 0 : index
    %2 = vector.load %arg3[%c0_2, %c0_3] : memref<8x32xbf16, #tpu.memory_space<vmem>>, vector<8x32xbf16>
    %cst = arith.constant dense<0.000000e+00> : vector<512x32xf32>
    %3 = tpu.matmul %1, %2, %cst {dimension_numbers = #tpu.dot_dimension_numbers<[1], [0], [0], [1], [0, 0, 1, 1], [], []>} : vector<512x8xbf16>, vector<8x32xbf16>, vector<512x32xf32> -> vector<512x32xf32>
    %c0_4 = arith.constant 0 : index
    %c0_5 = arith.constant 0 : index
    %4 = vector.load %arg4[%c0_4, %c0_5] : memref<1x32xf32, #tpu.memory_space<vmem>>, vector<1x32xf32>
    %5 = vector.broadcast %4 : vector<1x32xf32> to vector<512x32xf32>
    %6 = arith.addf %3, %5 : vector<512x32xf32>
    %7 = arith.truncf %6 : vector<512x32xf32> to vector<512x32xbf16>
    %c0_6 = arith.constant 0 : index
    %c0_7 = arith.constant 0 : index
    %c0_8 = arith.constant 0 : index
    %8 = vector.load %arg5[%c0_6, %c0_7, %c0_8] : memref<1x512x32xbf16, #tpu.memory_space<vmem>>, vector<1x512x32xbf16>
    %9 = vector.shape_cast %8 : vector<1x512x32xbf16> to vector<512x32xbf16>
    %10 = vector.shape_cast %7 : vector<512x32xbf16> to vector<1x512x32xbf16>
    tpu.vector_store %arg5[%c0_6, %c0_7, %c0_8], %10 {strides = array<i32>} : memref<1x512x32xbf16, #tpu.memory_space<vmem>>, vector<1x512x32xbf16>,
    %c0_i32 = arith.constant 0 : i32
    %11 = arith.cmpi eq, %arg1, %c0_i32 : i32
    %12 = arith.extui %11 : i1 to i32
    %c0_i32_9 = arith.constant 0 : i32
    %13 = arith.cmpi ne, %12, %c0_i32_9 : i32
    scf.if %13 {
      %cst_25 = arith.constant 0.000000e+00 : f32
      %39 = vector.broadcast %cst_25 : f32 to vector<1x1x32xf32>
      %c0_26 = arith.constant 0 : index
      %c0_27 = arith.constant 0 : index
      %c0_28 = arith.constant 0 : index
      %40 = vector.load %arg6[%c0_26, %c0_27, %c0_28] : memref<1x1x32xf32, #tpu.memory_space<vmem>>, vector<1x1x32xf32>
      tpu.vector_store %arg6[%c0_26, %c0_27, %c0_28], %39 {strides = array<i32>} : memref<1x1x32xf32, #tpu.memory_space<vmem>>, vector<1x1x32xf32>,
      %cst_29 = arith.constant 0.000000e+00 : f32
      %41 = vector.broadcast %cst_29 : f32 to vector<1x1x32xf32>
      %c0_30 = arith.constant 0 : index
      %c0_31 = arith.constant 0 : index
      %c0_32 = arith.constant 0 : index
      %42 = vector.load %arg7[%c0_30, %c0_31, %c0_32] : memref<1x1x32xf32, #tpu.memory_space<vmem>>, vector<1x1x32xf32>
      tpu.vector_store %arg7[%c0_30, %c0_31, %c0_32], %41 {strides = array<i32>} : memref<1x1x32xf32, #tpu.memory_space<vmem>>, vector<1x1x32xf32>,
    } else {
    }
    %c512_i32 = arith.constant 512 : i32
    %14 = arith.muli %arg1, %c512_i32 : i32
    %15 = tpu.iota {dimensions = array<i32: 0>} : vector<512x32xi32>
    %16 = vector.broadcast %14 : i32 to vector<512x32xi32>
    %17 = arith.addi %16, %15 : vector<512x32xi32>
    %c1600_i32 = arith.constant 1600 : i32
    %18 = vector.broadcast %c1600_i32 : i32 to vector<512x32xi32>
    %19 = arith.cmpi slt, %17, %18 : vector<512x32xi32>
    %cst_10 = arith.constant 0.000000e+00 : f32
    %20 = vector.broadcast %cst_10 : f32 to vector<512x32xf32>
    %21 = arith.select %19, %6, %20 : vector<512x32xi1>, vector<512x32xf32>
    %c0_11 = arith.constant 0 : index
    %c0_12 = arith.constant 0 : index
    %c0_13 = arith.constant 0 : index
    %22 = vector.load %arg6[%c0_11, %c0_12, %c0_13] : memref<1x1x32xf32, #tpu.memory_space<vmem>>, vector<1x1x32xf32>
    %23 = vector.shape_cast %22 : vector<1x1x32xf32> to vector<1x32xf32>
    %cst_14 = arith.constant dense<0.000000e+00> : vector<32xf32>
    %24 = vector.multi_reduction <add>, %21, %cst_14 [0] : vector<512x32xf32> to vector<32xf32>
    %25 = vector.shape_cast %24 : vector<32xf32> to vector<1x32xf32>
    %26 = arith.addf %23, %25 : vector<1x32xf32>
    %c0_15 = arith.constant 0 : index
    %c0_16 = arith.constant 0 : index
    %c0_17 = arith.constant 0 : index
    %27 = vector.load %arg6[%c0_15, %c0_16, %c0_17] : memref<1x1x32xf32, #tpu.memory_space<vmem>>, vector<1x1x32xf32>
    %28 = vector.shape_cast %27 : vector<1x1x32xf32> to vector<1x32xf32>
    %29 = vector.shape_cast %26 : vector<1x32xf32> to vector<1x1x32xf32>
    tpu.vector_store %arg6[%c0_15, %c0_16, %c0_17], %29 {strides = array<i32>} : memref<1x1x32xf32, #tpu.memory_space<vmem>>, vector<1x1x32xf32>,
    %c0_18 = arith.constant 0 : index
    %c0_19 = arith.constant 0 : index
    %c0_20 = arith.constant 0 : index
    %30 = vector.load %arg7[%c0_18, %c0_19, %c0_20] : memref<1x1x32xf32, #tpu.memory_space<vmem>>, vector<1x1x32xf32>
    %31 = vector.shape_cast %30 : vector<1x1x32xf32> to vector<1x32xf32>
    %32 = arith.mulf %21, %21 : vector<512x32xf32>
    %cst_21 = arith.constant dense<0.000000e+00> : vector<32xf32>
    %33 = vector.multi_reduction <add>, %32, %cst_21 [0] : vector<512x32xf32> to vector<32xf32>
    %34 = vector.shape_cast %33 : vector<32xf32> to vector<1x32xf32>
    %35 = arith.addf %31, %34 : vector<1x32xf32>
    %c0_22 = arith.constant 0 : index
    %c0_23 = arith.constant 0 : index
    %c0_24 = arith.constant 0 : index
    %36 = vector.load %arg7[%c0_22, %c0_23, %c0_24] : memref<1x1x32xf32, #tpu.memory_space<vmem>>, vector<1x1x32xf32>
    %37 = vector.shape_cast %36 : vector<1x1x32xf32> to vector<1x32xf32>
    %38 = vector.shape_cast %35 : vector<1x32xf32> to vector<1x1x32xf32>
    tpu.vector_store %arg7[%c0_22, %c0_23, %c0_24], %38 {strides = array<i32>} : memref<1x1x32xf32, #tpu.memory_space<vmem>>, vector<1x1x32xf32>,
    return
  }
  func.func @transform_0(%arg0: i32, %arg1: i32) -> (i32, i32, i32) {
    %c0_i32 = arith.constant 0 : i32
    %c0_i32_0 = arith.constant 0 : i32
    return %arg0, %arg1, %c0_i32 : i32, i32, i32
  }
  func.func @transform_1(%arg0: i32, %arg1: i32) -> (i32, i32) {
    %c0_i32 = arith.constant 0 : i32
    %c0_i32_0 = arith.constant 0 : i32
    %c0_i32_1 = arith.constant 0 : i32
    return %c0_i32, %c0_i32_0 : i32, i32
  }
  func.func @transform_2(%arg0: i32, %arg1: i32) -> (i32, i32) {
    %c0_i32 = arith.constant 0 : i32
    %c0_i32_0 = arith.constant 0 : i32
    %c0_i32_1 = arith.constant 0 : i32
    return %c0_i32, %c0_i32_0 : i32, i32
  }
  func.func @transform_3(%arg0: i32, %arg1: i32) -> (i32, i32, i32) {
    %c0_i32 = arith.constant 0 : i32
    %c0_i32_0 = arith.constant 0 : i32
    return %arg0, %arg1, %c0_i32 : i32, i32, i32
  }
  func.func @transform_4(%arg0: i32, %arg1: i32) -> (i32, i32, i32) {
    %c0_i32 = arith.constant 0 : i32
    %c0_i32_0 = arith.constant 0 : i32
    %c0_i32_1 = arith.constant 0 : i32
    return %arg0, %c0_i32, %c0_i32_0 : i32, i32, i32
  }
  func.func @transform_5(%arg0: i32, %arg1: i32) -> (i32, i32, i32) {
    %c0_i32 = arith.constant 0 : i32
    %c0_i32_0 = arith.constant 0 : i32
    %c0_i32_1 = arith.constant 0 : i32
    return %arg0, %c0_i32, %c0_i32_0 : i32, i32, i32
  }
}

</mosaic_0001>

<llo_original>
// kernel: tpu_custom_call.1
$region0: #{tpu_custom_call.1}
  #allocation0 [shape = 'u32[]', space=smem, size = 0x4, offset = 0x4, fixed_abs, tag = 'smem constant byte address 0x4 - core index']
  #allocation1 [shape = 'u32[144,128]{1,0:T(1,128)}', space=vmem, size = 0x12000, scoped, tag = 'internal scratch']
  %s0 = inlined_call_operand.vmem [shape: bf16[2,1600,8], index: 0, kind: input, shape index: {}]
  %s1 = inlined_call_operand.vmem [shape: bf16[8,32], index: 1, kind: input, shape index: {}]
  %s2 = inlined_call_operand.vmem [shape: f32[1,32], index: 2, kind: input, shape index: {}]
  %s3 = inlined_call_operand.vmem [shape: bf16[2,1600,32], index: 3, kind: output, shape index: {0}]
  %s4 = inlined_call_operand.hbm [shape: f32[2,1,32], index: 4, kind: output, shape index: {1}]
  %s5 = inlined_call_operand.hbm [shape: f32[2,1,32], index: 5, kind: output, shape index: {2}]
  %6 = xla_tuple %s3, %s4, %s5
  %s7 = sld [smem:[#allocation0]]
  $region109: #{tpu_custom_call.1} parent=0
    _
  %s9 = ssub.s32 1, %s7
  %s10 = scalar_select 0, %s9, %s7
  $region1: #{tpu_custom_call.1} parent=0
    #allocation2 [shape = 'u8[262144]{0}', space=vmem, size = 0x40000, scoped, tag = 'output window, operand 0']
    #allocation3 [shape = 'u8[1024]{0}', space=vmem, size = 0x400, scoped, tag = 'output window, operand 1']
    #allocation4 [shape = 's32[2]{0}', space=sflag, size = 0x8, scoped, tag = 'scoped memory for tpu_custom_call.1']
    #allocation5 [shape = 'u8[1024]{0}', space=vmem, size = 0x400, scoped, tag = 'output window, operand 2']
    #allocation6 [shape = 's32[2]{0}', space=sflag, size = 0x8, scoped, tag = 'scoped memory for tpu_custom_call.1']
    %11 = vsyncpa [#allocation4], 0
    %s12 = scalar_lea.sflag [#allocation4], 1
    %13 = vsyncpa %s12, 0
    %14 = vsyncpa [#allocation6], 0
    %s15 = scalar_lea.sflag [#allocation6], 1
    %16 = vsyncpa %s15, 0
    loop: start=0, step=1, limit=10
    $region2: #{tpu_custom_call.1} parent=1 // loop_pre_header
      _
    $region3: #{tpu_custom_call.1} parent=1 // loop_header
      %s18 = sphi 0, %s22
      %p19 = scmp.ge.s32.totalorder %s18, 10
      %s25 = sphi 0, %s37
      %s26 = sphi 0, %s33
      %s27 = sphi 0, %s25
      %s28 = sphi 0, %s26
      %s29 = sphi 0, %s27
      %s30 = sphi 0, %s28
      %s42 = sphi 0, %s44
      %s45 = sphi 0, %s42
      %s46 = sphi 0, %s45
      %s62 = sphi 0, %s46
      %s66 = sphi 0, %s66
      %s68 = sphi 0, %s66
      %s69 = sphi 0, %s68
      %s83 = sphi 0, %s69
      %s87 = sphi 0, %s87
      %s89 = sphi 0, %s87
      %s90 = sphi 0, %s89
      %s104 = sphi 0, %s90
      %s112 = sphi 0, %s114
      %s115 = sphi 0, %s112
      %s116 = sphi 0, %s115
      %s132 = sphi 0, %s116
      %s138 = sphi 0, %s140
      %s141 = sphi 0, %s138
      %s142 = sphi 0, %s141
      %s158 = sphi 0, %s142
      %s164 = sphi 0, %s166
      %s167 = sphi 0, %s164
      %s168 = sphi 0, %s167
      %s184 = sphi 0, %s168
    $region4: #{tpu_custom_call.1} parent=1 // loop_header_branch
      %21 = sbr.rel (%p19) target = $region8
    $region5: #{tpu_custom_call.1} parent=1 // loop_body
      %s23 = ssub.s32 %s18, 1
      %s24 = ssub.s32 %s18, 2
      %s31 = sadd.s32 1, %s26
      %p32 = scmp.ge.s32.totalorder %s31, 4
      %s33 = scalar_select %p32, 0, %s31
      %s34 = sadd.s32 1, %s25
      %s35 = scalar_select %p32, %s34, %s25
      %p36 = scmp.ge.s32.totalorder %s35, 2
      %s37 = scalar_select %p36, 0, %s35
      %s38 = ssub.s32 %s25, %s37
      %s39 = ssub.s32 %s26, %s33
      %s40 = sor.u32 %s38, %s39
      %p41 = scmp.eq.s32.totalorder %s40, 0
      %s43 = sadd.s32 %s42, 1
      %s44 = scalar_select %p41, %s42, %s43
      %p47 = pneg %p41
      %p48 = scmp.eq.s32.totalorder %s18, 7
      %p49 = por %p47, %p48
      %p50 = scmp.ne.s32.totalorder %s42, %s45
      %p51 = scmp.eq.s32.totalorder %s18, 0
      %p52 = por %p50, %p51
      %p53 = scmp.ne.s32.totalorder %s42, %s45
      %p54 = scmp.eq.s32.totalorder %s23, 7
      %p55 = por %p53, %p54
      %p56 = scmp.ne.s32.totalorder %s45, %s46
      %p57 = scmp.eq.s32.totalorder %s23, 0
      %p58 = por %p56, %p57
      %p59 = scmp.ne.s32.totalorder %s45, %s46
      %p60 = scmp.eq.s32.totalorder %s24, 7
      %p61 = por %p59, %p60
      %p63 = scmp.ne.s32.totalorder %s46, %s62
      %p64 = scmp.eq.s32.totalorder %s24, 0
      %p65 = por %p63, %p64
      %s67 = sadd.s32 %s66, 1
      %p70 = scmp.eq.s32.totalorder %s18, 7
      %p71 = scmp.ne.s32.totalorder %s66, %s68
      %p72 = scmp.eq.s32.totalorder %s18, 0
      %p73 = por %p71, %p72
      %p74 = scmp.ne.s32.totalorder %s66, %s68
      %p75 = scmp.eq.s32.totalorder %s23, 7
      %p76 = por %p74, %p75
      %p77 = scmp.ne.s32.totalorder %s68, %s69
      %p78 = scmp.eq.s32.totalorder %s23, 0
      %p79 = por %p77, %p78
      %p80 = scmp.ne.s32.totalorder %s68, %s69
      %p81 = scmp.eq.s32.totalorder %s24, 7
      %p82 = por %p80, %p81
      %p84 = scmp.ne.s32.totalorder %s69, %s83
      %p85 = scmp.eq.s32.totalorder %s24, 0
      %p86 = por %p84, %p85
      %s88 = sadd.s32 %s87, 1
      %p91 = scmp.eq.s32.totalorder %s18, 7
      %p92 = scmp.ne.s32.totalorder %s87, %s89
      %p93 = scmp.eq.s32.totalorder %s18, 0
      %p94 = por %p92, %p93
      %p95 = scmp.ne.s32.totalorder %s87, %s89
      %p96 = scmp.eq.s32.totalorder %s23, 7
      %p97 = por %p95, %p96
      %p98 = scmp.ne.s32.totalorder %s89, %s90
      %p99 = scmp.eq.s32.totalorder %s23, 0
      %p100 = por %p98, %p99
      %p101 = scmp.ne.s32.totalorder %s89, %s90
      %p102 = scmp.eq.s32.totalorder %s24, 7
      %p103 = por %p101, %p102
      %p105 = scmp.ne.s32.totalorder %s90, %s104
      %p106 = scmp.eq.s32.totalorder %s24, 0
      %p107 = por %p105, %p106
      %s108 = ssub.s32 %s25, %s37
      %s109 = ssub.s32 %s26, %s33
      %s110 = sor.u32 %s108, %s109
      %p111 = scmp.eq.s32.totalorder %s110, 0
      %s113 = sadd.s32 %s112, 1
      %s114 = scalar_select %p111, %s112, %s113
      %p117 = pneg %p111
      %p118 = scmp.eq.s32.totalorder %s18, 7
      %p119 = por %p117, %p118
      %p120 = scmp.ne.s32.totalorder %s112, %s115
      %p121 = scmp.eq.s32.totalorder %s18, 0
      %p122 = por %p120, %p121
      %p123 = scmp.ne.s32.totalorder %s112, %s115
      %p124 = scmp.eq.s32.totalorder %s23, 7
      %p125 = por %p123, %p124
      %p126 = scmp.ne.s32.totalorder %s115, %s116
      %p127 = scmp.eq.s32.totalorder %s23, 0
      %p128 = por %p126, %p127
      %p129 = scmp.ne.s32.totalorder %s115, %s116
      %p130 = scmp.eq.s32.totalorder %s24, 7
      %p131 = por %p129, %p130
      %p133 = scmp.ne.s32.totalorder %s116, %s132
      %p134 = scmp.eq.s32.totalorder %s24, 0
      %p135 = por %p133, %p134
      %s136 = ssub.s32 %s25, %s37
      %p137 = scmp.eq.s32.totalorder %s136, 0
      %s139 = sadd.s32 %s138, 1
      %s140 = scalar_select %p137, %s138, %s139
      %p143 = pneg %p137
      %p144 = scmp.eq.s32.totalorder %s18, 7
      %p145 = por %p143, %p144
      %p146 = scmp.ne.s32.totalorder %s138, %s141
      %p147 = scmp.eq.s32.totalorder %s18, 0
      %p148 = por %p146, %p147
      %p149 = scmp.ne.s32.totalorder %s138, %s141
      %p150 = scmp.eq.s32.totalorder %s23, 7
      %p151 = por %p149, %p150
      %p152 = scmp.ne.s32.totalorder %s141, %s142
      %p153 = scmp.eq.s32.totalorder %s23, 0
      %p154 = por %p152, %p153
      %p155 = scmp.ne.s32.totalorder %s141, %s142
      %p156 = scmp.eq.s32.totalorder %s24, 7
      %p157 = por %p155, %p156
      %p159 = scmp.ne.s32.totalorder %s142, %s158
      %p160 = scmp.eq.s32.totalorder %s24, 0
      %p161 = por %p159, %p160
      %s162 = ssub.s32 %s25, %s37
      %p163 = scmp.eq.s32.totalorder %s162, 0
      %s165 = sadd.s32 %s164, 1
      %s166 = scalar_select %p163, %s164, %s165
      %p169 = pneg %p163
      %p170 = scmp.eq.s32.totalorder %s18, 7
      %p171 = por %p169, %p170
      %p172 = scmp.ne.s32.totalorder %s164, %s167
      %p173 = scmp.eq.s32.totalorder %s18, 0
      %p174 = por %p172, %p173
      %p175 = scmp.ne.s32.totalorder %s164, %s167
      %p176 = scmp.eq.s32.totalorder %s23, 7
      %p177 = por %p175, %p176
      %p178 = scmp.ne.s32.totalorder %s167, %s168
      %p179 = scmp.eq.s32.totalorder %s23, 0
      %p180 = por %p178, %p179
      %p181 = scmp.ne.s32.totalorder %s167, %s168
      %p182 = scmp.eq.s32.totalorder %s24, 7
      %p183 = por %p181, %p182
      %p185 = scmp.ne.s32.totalorder %s168, %s184
      %p186 = scmp.eq.s32.totalorder %s24, 0
      %p187 = por %p185, %p186
      %p188 = scmp.le.s32.totalorder 1, %s18
      %p189 = scmp.lt.s32.totalorder %s18, 9
      %p190 = pnand %p188, %p189
      %p191 = pneg %p190
      // Predicated region
      $region9: #{tpu_custom_call.1} parent=5 // pred_check
        _
      $region10: #{tpu_custom_call.1} parent=5 // pred_check_branch
        %193 = sbr.rel (%p190) target = $region12
      $region11: #{tpu_custom_call.1} parent=5 // pred_region
        %s194 = ssub.s32 %s18, 1
        // Predicated region
        $region13: #{tpu_custom_call.1} parent=11 // pred_check
          %p195 = pneg %p79
        $region14: #{tpu_custom_call.1} parent=11 // pred_check_branch
          %197 = sbr.rel (%p195) target = $region16
        $region15: #{tpu_custom_call.1} parent=11 // pred_region
          _
        $region16: #{tpu_custom_call.1} parent=11 // pred_fallthru
          _
        // Predicated region
        $region17: #{tpu_custom_call.1} parent=11 // pred_check
          %p198 = pneg %p100
        $region18: #{tpu_custom_call.1} parent=11 // pred_check_branch
          %200 = sbr.rel (%p198) target = $region20
        $region19: #{tpu_custom_call.1} parent=11 // pred_region
          _
        $region20: #{tpu_custom_call.1} parent=11 // pred_fallthru
          _
      $region12: #{tpu_custom_call.1} parent=5 // pred_fallthru
        _
      %p201 = scmp.lt.s32.totalorder %s18, 8
      // Predicated region
      $region21: #{tpu_custom_call.1} parent=5 // pred_check
        %p202 = pneg %p201
      $region22: #{tpu_custom_call.1} parent=5 // pred_check_branch
        %204 = sbr.rel (%p202) target = $region24
      $region23: #{tpu_custom_call.1} parent=5 // pred_region
        // Predicated region
        $region25: #{tpu_custom_call.1} parent=23 // pred_check
          %p205 = pneg %p52
        $region26: #{tpu_custom_call.1} parent=23 // pred_check_branch
          %207 = sbr.rel (%p205) target = $region28
        $region27: #{tpu_custom_call.1} parent=23 // pred_region
          %s208 = smul.u32 64, %s26
          %s209 = ssub.s32 200, %s208
          %p210 = scmp.lt.s32.totalorder %s209, 64
          %s211 = scalar_select %p210, %s209, 64
          %s212 = smul.u32 64, %s211
          %p213 = scmp.lt.s32.totalorder %s25, 1
          %s214 = scalar_select %p213, %s25, 1
          %p215 = scmp.lt.s32.totalorder %s208, 199
          %s216 = scalar_select %p215, %s208, 199
          %s217 = smul.addr %s214, 200
          %s218 = sadd.s32 %s216, %s217
          %s219 = smul.addr %s218, 4
          %s220 = scalar_lea.vmem %s0, %s219
          %s221 = smul.u32 64, %s26
          %s222 = ssub.s32 200, %s221
          %p223 = scmp.lt.s32.totalorder %s222, 64
          %s224 = scalar_select %p223, %s222, 64
          %s225 = smul.u32 64, %s224
        $region28: #{tpu_custom_call.1} parent=23 // pred_fallthru
          _
      $region24: #{tpu_custom_call.1} parent=5 // pred_fallthru
        _
      %p226 = scmp.le.s32.totalorder 1, %s18
      %p227 = scmp.lt.s32.totalorder %s18, 9
      %p228 = pnand %p226, %p227
      %p229 = pneg %p228
      // Predicated region
      $region29: #{tpu_custom_call.1} parent=5 // pred_check
        _
      $region30: #{tpu_custom_call.1} parent=5 // pred_check_branch
        %231 = sbr.rel (%p228) target = $region32
      $region31: #{tpu_custom_call.1} parent=5 // pred_region
        %s232 = ssub.s32 %s18, 1
        %s233 = smul.u32 64, %s28
        %s234 = ssub.s32 200, %s233
        %p235 = scmp.lt.s32.totalorder %s234, 64
        %s236 = scalar_select %p235, %s234, 64
        %s237 = smul.u32 64, %s236
        %p238 = scmp.lt.s32.totalorder %s27, 1
        %s239 = scalar_select %p238, %s27, 1
        %p240 = scmp.lt.s32.totalorder %s233, 199
        %s241 = scalar_select %p240, %s233, 199
        %s242 = smul.addr %s239, 200
        %s243 = sadd.s32 %s241, %s242
        %s244 = smul.addr %s243, 4
        %s245 = scalar_lea.vmem %s0, %s244
        %p246 = pneg %p58
        %p247 = pneg %p55
        %p248 = pneg %p79
        %p249 = pneg %p76
        %p250 = pneg %p100
        %p251 = pneg %p97
        %p252 = pneg %p128
        %p253 = pneg %p125
        %s254 = sand.u32 %s115, 1
        %s255 = sand.u32 %s115, 1
        %s256 = smul.addr %s255, 256
        %s257 = scalar_lea.vmem [#allocation2], %s256
        %p258 = pneg %p154
        %p259 = pneg %p151
        %s260 = sand.u32 %s141, 1
        %s261 = scalar_lea.sflag [#allocation4], %s260
        %s262 = sand.u32 %s141, 1
        %s263 = scalar_lea.vmem [#allocation3], %s262
        %p264 = pneg %p180
        %p265 = pneg %p177
        %s266 = sand.u32 %s167, 1
        %s267 = scalar_lea.sflag [#allocation6], %s266
        %s268 = sand.u32 %s167, 1
        %s269 = scalar_lea.vmem [#allocation5], %s268
        %s270 = smul.u32 64, %s28
        %s271 = ssub.s32 200, %s270
        %p272 = scmp.lt.s32.totalorder %s271, 64
        %s273 = scalar_select %p272, %s271, 64
        %s274 = smul.u32 64, %s273
        %p275 = scmp.lt.s32.totalorder %s27, 1
        %s276 = scalar_select %p275, %s27, 1
        %p277 = scmp.lt.s32.totalorder %s270, 199
        %s278 = scalar_select %p277, %s270, 199
        %s279 = smul.addr %s276, 200
        %s280 = sadd.s32 %s278, %s279
        %s281 = smul.addr %s280, 4
        %s282 = scalar_lea.vmem %s0, %s281
        %s283 = smul.u32 64, %s28
        %s284 = ssub.s32 200, %s283
        %p285 = scmp.lt.s32.totalorder %s284, 64
        %s286 = scalar_select %p285, %s284, 64
        %s287 = smul.u32 64, %s286
        %s288 = smul.u32 64, %s28
        %s289 = ssub.s32 200, %s288
        %p290 = scmp.lt.s32.totalorder %s289, 64
        %s291 = scalar_select %p290, %s289, 64
        %s292 = smul.u32 64, %s291
        %v294 = vld [vmem:[%s282] sm:$0xf]
        %v295 = vld [vmem:[%s282 + $0x4] sm:$0xf]
        %v296 = vld [vmem:[%s282 + $0x8] sm:$0xf]
        %v297 = vld [vmem:[%s282 + $0xc] sm:$0xf]
        %v298 = vld [vmem:[%s282 + $0x10] sm:$0xf]
        %v299 = vld [vmem:[%s282 + $0x14] sm:$0xf]
        %v300 = vld [vmem:[%s282 + $0x18] sm:$0xf]
        %v301 = vld [vmem:[%s282 + $0x1c] sm:$0xf]
        %v302 = vld [vmem:[%s282 + $0x20] sm:$0xf]
        %v303 = vld [vmem:[%s282 + $0x24] sm:$0xf]
        %v304 = vld [vmem:[%s282 + $0x28] sm:$0xf]
        %v305 = vld [vmem:[%s282 + $0x2c] sm:$0xf]
        %v306 = vld [vmem:[%s282 + $0x30] sm:$0xf]
        %v307 = vld [vmem:[%s282 + $0x34] sm:$0xf]
        %v308 = vld [vmem:[%s282 + $0x38] sm:$0xf]
        %v309 = vld [vmem:[%s282 + $0x3c] sm:$0xf]
        %v310 = vld [vmem:[%s282 + $0x40] sm:$0xf]
        %v311 = vld [vmem:[%s282 + $0x44] sm:$0xf]
        %v312 = vld [vmem:[%s282 + $0x48] sm:$0xf]
        %v313 = vld [vmem:[%s282 + $0x4c] sm:$0xf]
        %v314 = vld [vmem:[%s282 + $0x50] sm:$0xf]
        %v315 = vld [vmem:[%s282 + $0x54] sm:$0xf]
        %v316 = vld [vmem:[%s282 + $0x58] sm:$0xf]
        %v317 = vld [vmem:[%s282 + $0x5c] sm:$0xf]
        %v318 = vld [vmem:[%s282 + $0x60] sm:$0xf]
        %v319 = vld [vmem:[%s282 + $0x64] sm:$0xf]
        %v320 = vld [vmem:[%s282 + $0x68] sm:$0xf]
        %v321 = vld [vmem:[%s282 + $0x6c] sm:$0xf]
        %v322 = vld [vmem:[%s282 + $0x70] sm:$0xf]
        %v323 = vld [vmem:[%s282 + $0x74] sm:$0xf]
        %v324 = vld [vmem:[%s282 + $0x78] sm:$0xf]
        %v325 = vld [vmem:[%s282 + $0x7c] sm:$0xf]
        %v326 = vld [vmem:[%s282 + $0x80] sm:$0xf]
        %v327 = vld [vmem:[%s282 + $0x84] sm:$0xf]
        %v328 = vld [vmem:[%s282 + $0x88] sm:$0xf]
        %v329 = vld [vmem:[%s282 + $0x8c] sm:$0xf]
        %v330 = vld [vmem:[%s282 + $0x90] sm:$0xf]
        %v331 = vld [vmem:[%s282 + $0x94] sm:$0xf]
        %v332 = vld [vmem:[%s282 + $0x98] sm:$0xf]
        %v333 = vld [vmem:[%s282 + $0x9c] sm:$0xf]
        %v334 = vld [vmem:[%s282 + $0xa0] sm:$0xf]
        %v335 = vld [vmem:[%s282 + $0xa4] sm:$0xf]
        %v336 = vld [vmem:[%s282 + $0xa8] sm:$0xf]
        %v337 = vld [vmem:[%s282 + $0xac] sm:$0xf]
        %v338 = vld [vmem:[%s282 + $0xb0] sm:$0xf]
        %v339 = vld [vmem:[%s282 + $0xb4] sm:$0xf]
        %v340 = vld [vmem:[%s282 + $0xb8] sm:$0xf]
        %v341 = vld [vmem:[%s282 + $0xbc] sm:$0xf]
        %v342 = vld [vmem:[%s282 + $0xc0] sm:$0xf]
        %v343 = vld [vmem:[%s282 + $0xc4] sm:$0xf]
        %v344 = vld [vmem:[%s282 + $0xc8] sm:$0xf]
        %v345 = vld [vmem:[%s282 + $0xcc] sm:$0xf]
        %v346 = vld [vmem:[%s282 + $0xd0] sm:$0xf]
        %v347 = vld [vmem:[%s282 + $0xd4] sm:$0xf]
        %v348 = vld [vmem:[%s282 + $0xd8] sm:$0xf]
        %v349 = vld [vmem:[%s282 + $0xdc] sm:$0xf]
        %v350 = vld [vmem:[%s282 + $0xe0] sm:$0xf]
        %v351 = vld [vmem:[%s282 + $0xe4] sm:$0xf]
        %v352 = vld [vmem:[%s282 + $0xe8] sm:$0xf]
        %v353 = vld [vmem:[%s282 + $0xec] sm:$0xf]
        %v354 = vld [vmem:[%s282 + $0xf0] sm:$0xf]
        %v355 = vld [vmem:[%s282 + $0xf4] sm:$0xf]
        %v356 = vld [vmem:[%s282 + $0xf8] sm:$0xf]
        %v357 = vld [vmem:[%s282 + $0xfc] sm:$0xf]
        %v358 = vld [vmem:[%s1] sm:$0xf]
        %v359 = vld [vmem:[%s2] sm:$0x1]
        %v361 = vlaneseq
        %v362 = vshrl.u32 %v361, 7
        %v363 = vsub.s32 0, %v362
        %v364 = vrot.slane %v359, %v363
        %v430 = vunpack.c.l.b16 %v294
        %v431 = vunpack.c.l.b16 %v295
        %v432 = vunpack.c.l.b16 %v296
        %v433 = vunpack.c.l.b16 %v297
        %v434 = vunpack.c.l.b16 %v298
        %v435 = vunpack.c.l.b16 %v299
        %v436 = vunpack.c.l.b16 %v300
        %v437 = vunpack.c.l.b16 %v301
        %v438 = vunpack.c.l.b16 %v302
        %v439 = vunpack.c.l.b16 %v303
        %v440 = vunpack.c.l.b16 %v304
        %v441 = vunpack.c.l.b16 %v305
        %v442 = vunpack.c.l.b16 %v306
        %v443 = vunpack.c.l.b16 %v307
        %v444 = vunpack.c.l.b16 %v308
        %v445 = vunpack.c.l.b16 %v309
        %v446 = vunpack.c.l.b16 %v310
        %v447 = vunpack.c.l.b16 %v311
        %v448 = vunpack.c.l.b16 %v312
        %v449 = vunpack.c.l.b16 %v313
        %v450 = vunpack.c.l.b16 %v314
        %v451 = vunpack.c.l.b16 %v315
        %v452 = vunpack.c.l.b16 %v316
        %v453 = vunpack.c.l.b16 %v317
        %v454 = vunpack.c.l.b16 %v318
        %v455 = vunpack.c.l.b16 %v319
        %v456 = vunpack.c.l.b16 %v320
        %v457 = vunpack.c.l.b16 %v321
        %v458 = vunpack.c.l.b16 %v322
        %v459 = vunpack.c.l.b16 %v323
        %v460 = vunpack.c.l.b16 %v324
        %v461 = vunpack.c.l.b16 %v325
        %v462 = vunpack.c.l.b16 %v326
        %v463 = vunpack.c.l.b16 %v327
        %v464 = vunpack.c.l.b16 %v328
        %v465 = vunpack.c.l.b16 %v329
        %v466 = vunpack.c.l.b16 %v330
        %v467 = vunpack.c.l.b16 %v331
        %v468 = vunpack.c.l.b16 %v332
        %v469 = vunpack.c.l.b16 %v333
        %v470 = vunpack.c.l.b16 %v334
        %v471 = vunpack.c.l.b16 %v335
        %v472 = vunpack.c.l.b16 %v336
        %v473 = vunpack.c.l.b16 %v337
        %v474 = vunpack.c.l.b16 %v338
        %v475 = vunpack.c.l.b16 %v339
        %v476 = vunpack.c.l.b16 %v340
        %v477 = vunpack.c.l.b16 %v341
        %v478 = vunpack.c.l.b16 %v342
        %v479 = vunpack.c.l.b16 %v343
        %v480 = vunpack.c.l.b16 %v344
        %v481 = vunpack.c.l.b16 %v345
        %v482 = vunpack.c.l.b16 %v346
        %v483 = vunpack.c.l.b16 %v347
        %v484 = vunpack.c.l.b16 %v348
        %v485 = vunpack.c.l.b16 %v349
        %v486 = vunpack.c.l.b16 %v350
        %v487 = vunpack.c.l.b16 %v351
        %v488 = vunpack.c.l.b16 %v352
        %v489 = vunpack.c.l.b16 %v353
        %v490 = vunpack.c.l.b16 %v354
        %v491 = vunpack.c.l.b16 %v355
        %v492 = vunpack.c.l.b16 %v356
        %v493 = vunpack.c.l.b16 %v357
        %v494 = vpack.c.b16 %v431, %v430
        %v495 = vpack.c.b16 %v433, %v432
        %v496 = vpack.c.b16 %v435, %v434
        %v497 = vpack.c.b16 %v437, %v436
        %v498 = vpack.c.b16 %v439, %v438
        %v499 = vpack.c.b16 %v441, %v440
        %v500 = vpack.c.b16 %v443, %v442
        %v501 = vpack.c.b16 %v445, %v444
        %v502 = vpack.c.b16 %v447, %v446
        %v503 = vpack.c.b16 %v449, %v448
        %v504 = vpack.c.b16 %v451, %v450
        %v505 = vpack.c.b16 %v453, %v452
        %v506 = vpack.c.b16 %v455, %v454
        %v507 = vpack.c.b16 %v457, %v456
        %v508 = vpack.c.b16 %v459, %v458
        %v509 = vpack.c.b16 %v461, %v460
        %v510 = vpack.c.b16 %v463, %v462
        %v511 = vpack.c.b16 %v465, %v464
        %v512 = vpack.c.b16 %v467, %v466
        %v513 = vpack.c.b16 %v469, %v468
        %v514 = vpack.c.b16 %v471, %v470
        %v515 = vpack.c.b16 %v473, %v472
        %v516 = vpack.c.b16 %v475, %v474
        %v517 = vpack.c.b16 %v477, %v476
        %v518 = vpack.c.b16 %v479, %v478
        %v519 = vpack.c.b16 %v481, %v480
        %v520 = vpack.c.b16 %v483, %v482
        %v521 = vpack.c.b16 %v485, %v484
        %v522 = vpack.c.b16 %v487, %v486
        %v523 = vpack.c.b16 %v489, %v488
        %v524 = vpack.c.b16 %v491, %v490
        %v525 = vpack.c.b16 %v493, %v492
        %vm526 = vcmask 64512
        %v528 = vsel %vm526, %v494, 0
        %v531 = vsel %vm526, %v495, 0
        %v534 = vsel %vm526, %v496, 0
        %v537 = vsel %vm526, %v497, 0
        %v540 = vsel %vm526, %v498, 0
        %v543 = vsel %vm526, %v499, 0
        %v546 = vsel %vm526, %v500, 0
        %v549 = vsel %vm526, %v501, 0
        %v552 = vsel %vm526, %v502, 0
        %v555 = vsel %vm526, %v503, 0
        %v558 = vsel %vm526, %v504, 0
        %v561 = vsel %vm526, %v505, 0
        %v564 = vsel %vm526, %v506, 0
        %v567 = vsel %vm526, %v507, 0
        %v570 = vsel %vm526, %v508, 0
        %v573 = vsel %vm526, %v509, 0
        %v576 = vsel %vm526, %v510, 0
        %v579 = vsel %vm526, %v511, 0
        %v582 = vsel %vm526, %v512, 0
        %v585 = vsel %vm526, %v513, 0
        %v588 = vsel %vm526, %v514, 0
        %v591 = vsel %vm526, %v515, 0
        %v594 = vsel %vm526, %v516, 0
        %v597 = vsel %vm526, %v517, 0
        %v600 = vsel %vm526, %v518, 0
        %v603 = vsel %vm526, %v519, 0
        %v606 = vsel %vm526, %v520, 0
        %v609 = vsel %vm526, %v521, 0
        %v612 = vsel %vm526, %v522, 0
        %v615 = vsel %vm526, %v523, 0
        %v618 = vsel %vm526, %v524, 0
        %v621 = vsel %vm526, %v525, 0
        %vm623 = vcmask 1043456
        %v625 = vsel %vm623, %v358, 0
        %627 = vmatprep.subr.bf16.mxu0 0
        %628 = vmatpush1.bf16.msra.mxu0 %v625
        %629 = vmatprep.subr.bf16.mxu0 0
        %630 = vmatpush1.bf16.msra.mxu0 0
        %631 = vmatprep.subr.bf16.mxu0 0
        %632 = vmatpush1.bf16.msra.mxu0 0
        %633 = vmatprep.subr.bf16.mxu0 0
        %634 = vmatpush1.bf16.msra.mxu0 0
        %635 = vmatprep.subr.bf16.mxu0 0
        %636 = vmatpush1.bf16.msra.mxu0 0
        %637 = vmatprep.subr.bf16.mxu0 0
        %638 = vmatpush1.bf16.msra.mxu0 0
        %639 = vmatprep.subr.bf16.mxu0 0
        %640 = vmatpush1.bf16.msra.mxu0 0
        %641 = vmatprep.subr.bf16.mxu0 0
        %642 = vmatpush1.bf16.msra.mxu0 0
        %643 = vmatprep.subr.bf16.mxu0 0
        %644 = vmatpush1.bf16.msra.mxu0 0
        %645 = vmatprep.subr.bf16.mxu0 0
        %646 = vmatpush1.bf16.msra.mxu0 0
        %647 = vmatprep.subr.bf16.mxu0 0
        %648 = vmatpush1.bf16.msra.mxu0 0
        %649 = vmatprep.subr.bf16.mxu0 0
        %650 = vmatpush1.bf16.msra.mxu0 0
        %651 = vmatprep.subr.bf16.mxu0 0
        %652 = vmatpush1.bf16.msra.mxu0 0
        %653 = vmatprep.subr.bf16.mxu0 0
        %654 = vmatpush1.bf16.msra.mxu0 0
        %655 = vmatprep.subr.bf16.mxu0 0
        %656 = vmatpush1.bf16.msra.mxu0 0
        %657 = vmatprep.subr.bf16.mxu0 0
        %658 = vmatpush1.bf16.msra.mxu0 0
        %659 = vmatprep.mubr.bf16.mxu0 0
        %660 = vmatmul.mubr.bf16.gmra.mrb[0].mxu0 %v528
        %v661 = vpop.f32.mrb[0].mxu0
        %v662 = vadd.f32 %v364, %v661
        %v663 = vpop.f32.mrb[0].mxu0
        %v664 = vpop.f32.mrb[0].mxu0
        %v665 = vadd.f32 %v364, %v664
        %v666 = vpop.f32.mrb[0].mxu0
        %667 = vmatprep.mubr.bf16.mxu0 0
        %668 = vmatmul.mubr.bf16.gmra.mrb[0].mxu0 %v531
        %v669 = vpop.f32.mrb[0].mxu0
        %v670 = vadd.f32 %v364, %v669
        %v671 = vpop.f32.mrb[0].mxu0
        %v672 = vpop.f32.mrb[0].mxu0
        %v673 = vadd.f32 %v364, %v672
        %v674 = vpop.f32.mrb[0].mxu0
        %675 = vmatprep.mubr.bf16.mxu0 0
        %676 = vmatmul.mubr.bf16.gmra.mrb[0].mxu0 %v534
        %v677 = vpop.f32.mrb[0].mxu0
        %v678 = vadd.f32 %v364, %v677
        %v679 = vpop.f32.mrb[0].mxu0
        %v680 = vpop.f32.mrb[0].mxu0
        %v681 = vadd.f32 %v364, %v680
        %v682 = vpop.f32.mrb[0].mxu0
        %683 = vmatprep.mubr.bf16.mxu0 0
        %684 = vmatmul.mubr.bf16.gmra.mrb[0].mxu0 %v537
        %v685 = vpop.f32.mrb[0].mxu0
        %v686 = vadd.f32 %v364, %v685
        %v687 = vpop.f32.mrb[0].mxu0
        %v688 = vpop.f32.mrb[0].mxu0
        %v689 = vadd.f32 %v364, %v688
        %v690 = vpop.f32.mrb[0].mxu0
        %691 = vmatprep.mubr.bf16.mxu0 0
        %692 = vmatmul.mubr.bf16.gmra.mrb[0].mxu0 %v540
        %v693 = vpop.f32.mrb[0].mxu0
        %v694 = vadd.f32 %v364, %v693
        %v695 = vpop.f32.mrb[0].mxu0
        %v696 = vpop.f32.mrb[0].mxu0
        %v697 = vadd.f32 %v364, %v696
        %v698 = vpop.f32.mrb[0].mxu0
        %699 = vmatprep.mubr.bf16.mxu0 0
        %700 = vmatmul.mubr.bf16.gmra.mrb[0].mxu0 %v543
        %v701 = vpop.f32.mrb[0].mxu0
        %v702 = vadd.f32 %v364, %v701
        %v703 = vpop.f32.mrb[0].mxu0
        %v704 = vpop.f32.mrb[0].mxu0
        %v705 = vadd.f32 %v364, %v704
        %v706 = vpop.f32.mrb[0].mxu0
        %707 = vmatprep.mubr.bf16.mxu0 0
        %708 = vmatmul.mubr.bf16.gmra.mrb[0].mxu0 %v546
        %v709 = vpop.f32.mrb[0].mxu0
        %v710 = vadd.f32 %v364, %v709
        %v711 = vpop.f32.mrb[0].mxu0
        %v712 = vpop.f32.mrb[0].mxu0
        %v713 = vadd.f32 %v364, %v712
        %v714 = vpop.f32.mrb[0].mxu0
        %715 = vmatprep.mubr.bf16.mxu0 0
        %716 = vmatmul.mubr.bf16.gmra.mrb[0].mxu0 %v549
        %v717 = vpop.f32.mrb[0].mxu0
        %v718 = vadd.f32 %v364, %v717
        %v719 = vpop.f32.mrb[0].mxu0
        %v720 = vpop.f32.mrb[0].mxu0
        %v721 = vadd.f32 %v364, %v720
        %v722 = vpop.f32.mrb[0].mxu0
        %723 = vmatprep.mubr.bf16.mxu0 0
        %724 = vmatmul.mubr.bf16.gmra.mrb[0].mxu0 %v552
        %v725 = vpop.f32.mrb[0].mxu0
        %v726 = vadd.f32 %v364, %v725
        %v727 = vpop.f32.mrb[0].mxu0
        %v728 = vpop.f32.mrb[0].mxu0
        %v729 = vadd.f32 %v364, %v728
        %v730 = vpop.f32.mrb[0].mxu0
        %731 = vmatprep.mubr.bf16.mxu0 0
        %732 = vmatmul.mubr.bf16.gmra.mrb[0].mxu0 %v555
        %v733 = vpop.f32.mrb[0].mxu0
        %v734 = vadd.f32 %v364, %v733
        %v735 = vpop.f32.mrb[0].mxu0
        %v736 = vpop.f32.mrb[0].mxu0
        %v737 = vadd.f32 %v364, %v736
        %v738 = vpop.f32.mrb[0].mxu0
        %739 = vmatprep.mubr.bf16.mxu0 0
        %740 = vmatmul.mubr.bf16.gmra.mrb[0].mxu0 %v558
        %v741 = vpop.f32.mrb[0].mxu0
        %v742 = vadd.f32 %v364, %v741
        %v743 = vpop.f32.mrb[0].mxu0
        %v744 = vpop.f32.mrb[0].mxu0
        %v745 = vadd.f32 %v364, %v744
        %v746 = vpop.f32.mrb[0].mxu0
        %747 = vmatprep.mubr.bf16.mxu0 0
        %748 = vmatmul.mubr.bf16.gmra.mrb[0].mxu0 %v561
        %v749 = vpop.f32.mrb[0].mxu0
        %v750 = vadd.f32 %v364, %v749
        %v751 = vpop.f32.mrb[0].mxu0
        %v752 = vpop.f32.mrb[0].mxu0
        %v753 = vadd.f32 %v364, %v752
        %v754 = vpop.f32.mrb[0].mxu0
        %755 = vmatprep.mubr.bf16.mxu0 0
        %756 = vmatmul.mubr.bf16.gmra.mrb[0].mxu0 %v564
        %v757 = vpop.f32.mrb[0].mxu0
        %v758 = vadd.f32 %v364, %v757
        %v759 = vpop.f32.mrb[0].mxu0
        %v760 = vpop.f32.mrb[0].mxu0
        %v761 = vadd.f32 %v364, %v760
        %v762 = vpop.f32.mrb[0].mxu0
        %763 = vmatprep.mubr.bf16.mxu0 0
        %764 = vmatmul.mubr.bf16.gmra.mrb[0].mxu0 %v567
        %v765 = vpop.f32.mrb[0].mxu0
        %v766 = vadd.f32 %v364, %v765
        %v767 = vpop.f32.mrb[0].mxu0
        %v768 = vpop.f32.mrb[0].mxu0
        %v769 = vadd.f32 %v364, %v768
        %v770 = vpop.f32.mrb[0].mxu0
        %771 = vmatprep.mubr.bf16.mxu0 0
        %772 = vmatmul.mubr.bf16.gmra.mrb[0].mxu0 %v570
        %v773 = vpop.f32.mrb[0].mxu0
        %v774 = vadd.f32 %v364, %v773
        %v775 = vpop.f32.mrb[0].mxu0
        %v776 = vpop.f32.mrb[0].mxu0
        %v777 = vadd.f32 %v364, %v776
        %v778 = vpop.f32.mrb[0].mxu0
        %779 = vmatprep.mubr.bf16.mxu0 0
        %780 = vmatmul.mubr.bf16.gmra.mrb[0].mxu0 %v573
        %v781 = vpop.f32.mrb[0].mxu0
        %v782 = vadd.f32 %v364, %v781
        %v783 = vpop.f32.mrb[0].mxu0
        %v784 = vpop.f32.mrb[0].mxu0
        %v785 = vadd.f32 %v364, %v784
        %v786 = vpop.f32.mrb[0].mxu0
        %787 = vmatprep.mubr.bf16.mxu0 0
        %788 = vmatmul.mubr.bf16.gmra.mrb[0].mxu0 %v576
        %v789 = vpop.f32.mrb[0].mxu0
        %v790 = vadd.f32 %v364, %v789
        %v791 = vpop.f32.mrb[0].mxu0
        %v792 = vpop.f32.mrb[0].mxu0
        %v793 = vadd.f32 %v364, %v792
        %v794 = vpop.f32.mrb[0].mxu0
        %795 = vmatprep.mubr.bf16.mxu0 0
        %796 = vmatmul.mubr.bf16.gmra.mrb[0].mxu0 %v579
        %v797 = vpop.f32.mrb[0].mxu0
        %v798 = vadd.f32 %v364, %v797
        %v799 = vpop.f32.mrb[0].mxu0
        %v800 = vpop.f32.mrb[0].mxu0
        %v801 = vadd.f32 %v364, %v800
        %v802 = vpop.f32.mrb[0].mxu0
        %803 = vmatprep.mubr.bf16.mxu0 0
        %804 = vmatmul.mubr.bf16.gmra.mrb[0].mxu0 %v582
        %v805 = vpop.f32.mrb[0].mxu0
        %v806 = vadd.f32 %v364, %v805
        %v807 = vpop.f32.mrb[0].mxu0
        %v808 = vpop.f32.mrb[0].mxu0
        %v809 = vadd.f32 %v364, %v808
        %v810 = vpop.f32.mrb[0].mxu0
        %811 = vmatprep.mubr.bf16.mxu0 0
        %812 = vmatmul.mubr.bf16.gmra.mrb[0].mxu0 %v585
        %v813 = vpop.f32.mrb[0].mxu0
        %v814 = vadd.f32 %v364, %v813
        %v815 = vpop.f32.mrb[0].mxu0
        %v816 = vpop.f32.mrb[0].mxu0
        %v817 = vadd.f32 %v364, %v816
        %v818 = vpop.f32.mrb[0].mxu0
        %819 = vmatprep.mubr.bf16.mxu0 0
        %820 = vmatmul.mubr.bf16.gmra.mrb[0].mxu0 %v588
        %v821 = vpop.f32.mrb[0].mxu0
        %v822 = vadd.f32 %v364, %v821
        %v823 = vpop.f32.mrb[0].mxu0
        %v824 = vpop.f32.mrb[0].mxu0
        %v825 = vadd.f32 %v364, %v824
        %v826 = vpop.f32.mrb[0].mxu0
        %827 = vmatprep.mubr.bf16.mxu0 0
        %828 = vmatmul.mubr.bf16.gmra.mrb[0].mxu0 %v591
        %v829 = vpop.f32.mrb[0].mxu0
        %v830 = vadd.f32 %v364, %v829
        %v831 = vpop.f32.mrb[0].mxu0
        %v832 = vpop.f32.mrb[0].mxu0
        %v833 = vadd.f32 %v364, %v832
        %v834 = vpop.f32.mrb[0].mxu0
        %835 = vmatprep.mubr.bf16.mxu0 0
        %836 = vmatmul.mubr.bf16.gmra.mrb[0].mxu0 %v594
        %v837 = vpop.f32.mrb[0].mxu0
        %v838 = vadd.f32 %v364, %v837
        %v839 = vpop.f32.mrb[0].mxu0
        %v840 = vpop.f32.mrb[0].mxu0
        %v841 = vadd.f32 %v364, %v840
        %v842 = vpop.f32.mrb[0].mxu0
        %843 = vmatprep.mubr.bf16.mxu0 0
        %844 = vmatmul.mubr.bf16.gmra.mrb[0].mxu0 %v597
        %v845 = vpop.f32.mrb[0].mxu0
        %v846 = vadd.f32 %v364, %v845
        %v847 = vpop.f32.mrb[0].mxu0
        %v848 = vpop.f32.mrb[0].mxu0
        %v849 = vadd.f32 %v364, %v848
        %v850 = vpop.f32.mrb[0].mxu0
        %851 = vmatprep.mubr.bf16.mxu0 0
        %852 = vmatmul.mubr.bf16.gmra.mrb[0].mxu0 %v600
        %v853 = vpop.f32.mrb[0].mxu0
        %v854 = vadd.f32 %v364, %v853
        %v855 = vpop.f32.mrb[0].mxu0
        %v856 = vpop.f32.mrb[0].mxu0
        %v857 = vadd.f32 %v364, %v856
        %v858 = vpop.f32.mrb[0].mxu0
        %859 = vmatprep.mubr.bf16.mxu0 0
        %860 = vmatmul.mubr.bf16.gmra.mrb[0].mxu0 %v603
        %v861 = vpop.f32.mrb[0].mxu0
        %v862 = vadd.f32 %v364, %v861
        %v863 = vpop.f32.mrb[0].mxu0
        %v864 = vpop.f32.mrb[0].mxu0
        %v865 = vadd.f32 %v364, %v864
        %v866 = vpop.f32.mrb[0].mxu0
        %867 = vmatprep.mubr.bf16.mxu0 0
        %868 = vmatmul.mubr.bf16.gmra.mrb[0].mxu0 %v606
        %v869 = vpop.f32.mrb[0].mxu0
        %v870 = vadd.f32 %v364, %v869
        %v871 = vpop.f32.mrb[0].mxu0
        %v872 = vpop.f32.mrb[0].mxu0
        %v873 = vadd.f32 %v364, %v872
        %v874 = vpop.f32.mrb[0].mxu0
        %875 = vmatprep.mubr.bf16.mxu0 0
        %876 = vmatmul.mubr.bf16.gmra.mrb[0].mxu0 %v609
        %v877 = vpop.f32.mrb[0].mxu0
        %v878 = vadd.f32 %v364, %v877
        %v879 = vpop.f32.mrb[0].mxu0
        %v880 = vpop.f32.mrb[0].mxu0
        %v881 = vadd.f32 %v364, %v880
        %v882 = vpop.f32.mrb[0].mxu0
        %883 = vmatprep.mubr.bf16.mxu0 0
        %884 = vmatmul.mubr.bf16.gmra.mrb[0].mxu0 %v612
        %v885 = vpop.f32.mrb[0].mxu0
        %v886 = vadd.f32 %v364, %v885
        %v887 = vpop.f32.mrb[0].mxu0
        %v888 = vpop.f32.mrb[0].mxu0
        %v889 = vadd.f32 %v364, %v888
        %v890 = vpop.f32.mrb[0].mxu0
        %891 = vmatprep.mubr.bf16.mxu0 0
        %892 = vmatmul.mubr.bf16.gmra.mrb[0].mxu0 %v615
        %v893 = vpop.f32.mrb[0].mxu0
        %v894 = vadd.f32 %v364, %v893
        %v895 = vpop.f32.mrb[0].mxu0
        %v896 = vpop.f32.mrb[0].mxu0
        %v897 = vadd.f32 %v364, %v896
        %v898 = vpop.f32.mrb[0].mxu0
        %899 = vmatprep.mubr.bf16.mxu0 0
        %900 = vmatmul.mubr.bf16.gmra.mrb[0].mxu0 %v618
        %v901 = vpop.f32.mrb[0].mxu0
        %v902 = vadd.f32 %v364, %v901
        %v903 = vpop.f32.mrb[0].mxu0
        %v904 = vpop.f32.mrb[0].mxu0
        %v905 = vadd.f32 %v364, %v904
        %v906 = vpop.f32.mrb[0].mxu0
        %907 = vmatprep.mubr.bf16.mxu0 0
        %908 = vmatmul.mubr.bf16.gmra.mrb[0].mxu0 %v621
        %v909 = vpop.f32.mrb[0].mxu0
        %v910 = vadd.f32 %v364, %v909
        %v911 = vpop.f32.mrb[0].mxu0
        %v912 = vpop.f32.mrb[0].mxu0
        %v913 = vadd.f32 %v364, %v912
        %v914 = vpop.f32.mrb[0].mxu0
        %915 = vdwg.mxu0
        %v916 = vpack.c.bf16 %v665, %v662
        %v917 = vpack.c.bf16 %v673, %v670
        %v918 = vpack.c.bf16 %v681, %v678
        %v919 = vpack.c.bf16 %v689, %v686
        %v920 = vpack.c.bf16 %v697, %v694
        %v921 = vpack.c.bf16 %v705, %v702
        %v922 = vpack.c.bf16 %v713, %v710
        %v923 = vpack.c.bf16 %v721, %v718
        %v924 = vpack.c.bf16 %v729, %v726
        %v925 = vpack.c.bf16 %v737, %v734
        %v926 = vpack.c.bf16 %v745, %v742
        %v927 = vpack.c.bf16 %v753, %v750
        %v928 = vpack.c.bf16 %v761, %v758
        %v929 = vpack.c.bf16 %v769, %v766
        %v930 = vpack.c.bf16 %v777, %v774
        %v931 = vpack.c.bf16 %v785, %v782
        %v932 = vpack.c.bf16 %v793, %v790
        %v933 = vpack.c.bf16 %v801, %v798
        %v934 = vpack.c.bf16 %v809, %v806
        %v935 = vpack.c.bf16 %v817, %v814
        %v936 = vpack.c.bf16 %v825, %v822
        %v937 = vpack.c.bf16 %v833, %v830
        %v938 = vpack.c.bf16 %v841, %v838
        %v939 = vpack.c.bf16 %v849, %v846
        %v940 = vpack.c.bf16 %v857, %v854
        %v941 = vpack.c.bf16 %v865, %v862
        %v942 = vpack.c.bf16 %v873, %v870
        %v943 = vpack.c.bf16 %v881, %v878
        %v944 = vpack.c.bf16 %v889, %v886
        %v945 = vpack.c.bf16 %v897, %v894
        %v946 = vpack.c.bf16 %v905, %v902
        %v947 = vpack.c.bf16 %v913, %v910
        %v980 = vunpack.c.l.b16 %v916
        %v981 = vunpack.c.h.b16 %v916
        %v982 = vunpack.c.l.b16 %v917
        %v983 = vunpack.c.h.b16 %v917
        %v984 = vunpack.c.l.b16 %v918
        %v985 = vunpack.c.h.b16 %v918
        %v986 = vunpack.c.l.b16 %v919
        %v987 = vunpack.c.h.b16 %v919
        %v988 = vunpack.c.l.b16 %v920
        %v989 = vunpack.c.h.b16 %v920
        %v990 = vunpack.c.l.b16 %v921
        %v991 = vunpack.c.h.b16 %v921
        %v992 = vunpack.c.l.b16 %v922
        %v993 = vunpack.c.h.b16 %v922
        %v994 = vunpack.c.l.b16 %v923
        %v995 = vunpack.c.h.b16 %v923
        %v996 = vunpack.c.l.b16 %v924
        %v997 = vunpack.c.h.b16 %v924
        %v998 = vunpack.c.l.b16 %v925
        %v999 = vunpack.c.h.b16 %v925
        %v1000 = vunpack.c.l.b16 %v926
        %v1001 = vunpack.c.h.b16 %v926
        %v1002 = vunpack.c.l.b16 %v927
        %v1003 = vunpack.c.h.b16 %v927
        %v1004 = vunpack.c.l.b16 %v928
        %v1005 = vunpack.c.h.b16 %v928
        %v1006 = vunpack.c.l.b16 %v929
        %v1007 = vunpack.c.h.b16 %v929
        %v1008 = vunpack.c.l.b16 %v930
        %v1009 = vunpack.c.h.b16 %v930
        %v1010 = vunpack.c.l.b16 %v931
        %v1011 = vunpack.c.h.b16 %v931
        %v1012 = vunpack.c.l.b16 %v932
        %v1013 = vunpack.c.h.b16 %v932
        %v1014 = vunpack.c.l.b16 %v933
        %v1015 = vunpack.c.h.b16 %v933
        %v1016 = vunpack.c.l.b16 %v934
        %v1017 = vunpack.c.h.b16 %v934
        %v1018 = vunpack.c.l.b16 %v935
        %v1019 = vunpack.c.h.b16 %v935
        %v1020 = vunpack.c.l.b16 %v936
        %v1021 = vunpack.c.h.b16 %v936
        %v1022 = vunpack.c.l.b16 %v937
        %v1023 = vunpack.c.h.b16 %v937
        %v1024 = vunpack.c.l.b16 %v938
        %v1025 = vunpack.c.h.b16 %v938
        %v1026 = vunpack.c.l.b16 %v939
        %v1027 = vunpack.c.h.b16 %v939
        %v1028 = vunpack.c.l.b16 %v940
        %v1029 = vunpack.c.h.b16 %v940
        %v1030 = vunpack.c.l.b16 %v941
        %v1031 = vunpack.c.h.b16 %v941
        %v1032 = vunpack.c.l.b16 %v942
        %v1033 = vunpack.c.h.b16 %v942
        %v1034 = vunpack.c.l.b16 %v943
        %v1035 = vunpack.c.h.b16 %v943
        %v1036 = vunpack.c.l.b16 %v944
        %v1037 = vunpack.c.h.b16 %v944
        %v1038 = vunpack.c.l.b16 %v945
        %v1039 = vunpack.c.h.b16 %v945
        %v1040 = vunpack.c.l.b16 %v946
        %v1041 = vunpack.c.h.b16 %v946
        %v1042 = vunpack.c.l.b16 %v947
        %v1043 = vunpack.c.h.b16 %v947
        %v1044 = vpack.c.b16 %v980, %v980
        %v1045 = vpack.c.b16 %v981, %v981
        %v1046 = vpack.c.b16 %v982, %v982
        %v1047 = vpack.c.b16 %v983, %v983
        %v1048 = vpack.c.b16 %v984, %v984
        %v1049 = vpack.c.b16 %v985, %v985
        %v1050 = vpack.c.b16 %v986, %v986
        %v1051 = vpack.c.b16 %v987, %v987
        %v1052 = vpack.c.b16 %v988, %v988
        %v1053 = vpack.c.b16 %v989, %v989
        %v1054 = vpack.c.b16 %v990, %v990
        %v1055 = vpack.c.b16 %v991, %v991
        %v1056 = vpack.c.b16 %v992, %v992
        %v1057 = vpack.c.b16 %v993, %v993
        %v1058 = vpack.c.b16 %v994, %v994
        %v1059 = vpack.c.b16 %v995, %v995
        %v1060 = vpack.c.b16 %v996, %v996
        %v1061 = vpack.c.b16 %v997, %v997
        %v1062 = vpack.c.b16 %v998, %v998
        %v1063 = vpack.c.b16 %v999, %v999
        %v1064 = vpack.c.b16 %v1000, %v1000
        %v1065 = vpack.c.b16 %v1001, %v1001
        %v1066 = vpack.c.b16 %v1002, %v1002
        %v1067 = vpack.c.b16 %v1003, %v1003
        %v1068 = vpack.c.b16 %v1004, %v1004
        %v1069 = vpack.c.b16 %v1005, %v1005
        %v1070 = vpack.c.b16 %v1006, %v1006
        %v1071 = vpack.c.b16 %v1007, %v1007
        %v1072 = vpack.c.b16 %v1008, %v1008
        %v1073 = vpack.c.b16 %v1009, %v1009
        %v1074 = vpack.c.b16 %v1010, %v1010
        %v1075 = vpack.c.b16 %v1011, %v1011
        %v1076 = vpack.c.b16 %v1012, %v1012
        %v1077 = vpack.c.b16 %v1013, %v1013
        %v1078 = vpack.c.b16 %v1014, %v1014
        %v1079 = vpack.c.b16 %v1015, %v1015
        %v1080 = vpack.c.b16 %v1016, %v1016
        %v1081 = vpack.c.b16 %v1017, %v1017
        %v1082 = vpack.c.b16 %v1018, %v1018
        %v1083 = vpack.c.b16 %v1019, %v1019
        %v1084 = vpack.c.b16 %v1020, %v1020
        %v1085 = vpack.c.b16 %v1021, %v1021
        %v1086 = vpack.c.b16 %v1022, %v1022
        %v1087 = vpack.c.b16 %v1023, %v1023
        %v1088 = vpack.c.b16 %v1024, %v1024
        %v1089 = vpack.c.b16 %v1025, %v1025
        %v1090 = vpack.c.b16 %v1026, %v1026
        %v1091 = vpack.c.b16 %v1027, %v1027
        %v1092 = vpack.c.b16 %v1028, %v1028
        %v1093 = vpack.c.b16 %v1029, %v1029
        %v1094 = vpack.c.b16 %v1030, %v1030
        %v1095 = vpack.c.b16 %v1031, %v1031
        %v1096 = vpack.c.b16 %v1032, %v1032
        %v1097 = vpack.c.b16 %v1033, %v1033
        %v1098 = vpack.c.b16 %v1034, %v1034
        %v1099 = vpack.c.b16 %v1035, %v1035
        %v1100 = vpack.c.b16 %v1036, %v1036
        %v1101 = vpack.c.b16 %v1037, %v1037
        %v1102 = vpack.c.b16 %v1038, %v1038
        %v1103 = vpack.c.b16 %v1039, %v1039
        %v1104 = vpack.c.b16 %v1040, %v1040
        %v1105 = vpack.c.b16 %v1041, %v1041
        %v1106 = vpack.c.b16 %v1042, %v1042
        %v1107 = vpack.c.b16 %v1043, %v1043
        %vm1172 = vcmask 257024
        %1173 = vst.msk [vmem:[%s257] sm:$0xf] %vm1172, %v1044
        %1174 = vst.msk [vmem:[%s257 + $0x4] sm:$0xf] %vm1172, %v1045
        %1175 = vst.msk [vmem:[%s257 + $0x8] sm:$0xf] %vm1172, %v1046
        %1176 = vst.msk [vmem:[%s257 + $0xc] sm:$0xf] %vm1172, %v1047
        %1177 = vst.msk [vmem:[%s257 + $0x10] sm:$0xf] %vm1172, %v1048
        %1178 = vst.msk [vmem:[%s257 + $0x14] sm:$0xf] %vm1172, %v1049
        %1179 = vst.msk [vmem:[%s257 + $0x18] sm:$0xf] %vm1172, %v1050
        %1180 = vst.msk [vmem:[%s257 + $0x1c] sm:$0xf] %vm1172, %v1051
        %1181 = vst.msk [vmem:[%s257 + $0x20] sm:$0xf] %vm1172, %v1052
        %1182 = vst.msk [vmem:[%s257 + $0x24] sm:$0xf] %vm1172, %v1053
        %1183 = vst.msk [vmem:[%s257 + $0x28] sm:$0xf] %vm1172, %v1054
        %1184 = vst.msk [vmem:[%s257 + $0x2c] sm:$0xf] %vm1172, %v1055
        %1185 = vst.msk [vmem:[%s257 + $0x30] sm:$0xf] %vm1172, %v1056
        %1186 = vst.msk [vmem:[%s257 + $0x34] sm:$0xf] %vm1172, %v1057
        %1187 = vst.msk [vmem:[%s257 + $0x38] sm:$0xf] %vm1172, %v1058
        %1188 = vst.msk [vmem:[%s257 + $0x3c] sm:$0xf] %vm1172, %v1059
        %1189 = vst.msk [vmem:[%s257 + $0x40] sm:$0xf] %vm1172, %v1060
        %1190 = vst.msk [vmem:[%s257 + $0x44] sm:$0xf] %vm1172, %v1061
        %1191 = vst.msk [vmem:[%s257 + $0x48] sm:$0xf] %vm1172, %v1062
        %1192 = vst.msk [vmem:[%s257 + $0x4c] sm:$0xf] %vm1172, %v1063
        %1193 = vst.msk [vmem:[%s257 + $0x50] sm:$0xf] %vm1172, %v1064
        %1194 = vst.msk [vmem:[%s257 + $0x54] sm:$0xf] %vm1172, %v1065
        %1195 = vst.msk [vmem:[%s257 + $0x58] sm:$0xf] %vm1172, %v1066
        %1196 = vst.msk [vmem:[%s257 + $0x5c] sm:$0xf] %vm1172, %v1067
        %1197 = vst.msk [vmem:[%s257 + $0x60] sm:$0xf] %vm1172, %v1068
        %1198 = vst.msk [vmem:[%s257 + $0x64] sm:$0xf] %vm1172, %v1069
        %1199 = vst.msk [vmem:[%s257 + $0x68] sm:$0xf] %vm1172, %v1070
        %1200 = vst.msk [vmem:[%s257 + $0x6c] sm:$0xf] %vm1172, %v1071
        %1201 = vst.msk [vmem:[%s257 + $0x70] sm:$0xf] %vm1172, %v1072
        %1202 = vst.msk [vmem:[%s257 + $0x74] sm:$0xf] %vm1172, %v1073
        %1203 = vst.msk [vmem:[%s257 + $0x78] sm:$0xf] %vm1172, %v1074
        %1204 = vst.msk [vmem:[%s257 + $0x7c] sm:$0xf] %vm1172, %v1075
        %1205 = vst.msk [vmem:[%s257 + $0x80] sm:$0xf] %vm1172, %v1076
        %1206 = vst.msk [vmem:[%s257 + $0x84] sm:$0xf] %vm1172, %v1077
        %1207 = vst.msk [vmem:[%s257 + $0x88] sm:$0xf] %vm1172, %v1078
        %1208 = vst.msk [vmem:[%s257 + $0x8c] sm:$0xf] %vm1172, %v1079
        %1209 = vst.msk [vmem:[%s257 + $0x90] sm:$0xf] %vm1172, %v1080
        %1210 = vst.msk [vmem:[%s257 + $0x94] sm:$0xf] %vm1172, %v1081
        %1211 = vst.msk [vmem:[%s257 + $0x98] sm:$0xf] %vm1172, %v1082
        %1212 = vst.msk [vmem:[%s257 + $0x9c] sm:$0xf] %vm1172, %v1083
        %1213 = vst.msk [vmem:[%s257 + $0xa0] sm:$0xf] %vm1172, %v1084
        %1214 = vst.msk [vmem:[%s257 + $0xa4] sm:$0xf] %vm1172, %v1085
        %1215 = vst.msk [vmem:[%s257 + $0xa8] sm:$0xf] %vm1172, %v1086
        %1216 = vst.msk [vmem:[%s257 + $0xac] sm:$0xf] %vm1172, %v1087
        %1217 = vst.msk [vmem:[%s257 + $0xb0] sm:$0xf] %vm1172, %v1088
        %1218 = vst.msk [vmem:[%s257 + $0xb4] sm:$0xf] %vm1172, %v1089
        %1219 = vst.msk [vmem:[%s257 + $0xb8] sm:$0xf] %vm1172, %v1090
        %1220 = vst.msk [vmem:[%s257 + $0xbc] sm:$0xf] %vm1172, %v1091
        %1221 = vst.msk [vmem:[%s257 + $0xc0] sm:$0xf] %vm1172, %v1092
        %1222 = vst.msk [vmem:[%s257 + $0xc4] sm:$0xf] %vm1172, %v1093
        %1223 = vst.msk [vmem:[%s257 + $0xc8] sm:$0xf] %vm1172, %v1094
        %1224 = vst.msk [vmem:[%s257 + $0xcc] sm:$0xf] %vm1172, %v1095
        %1225 = vst.msk [vmem:[%s257 + $0xd0] sm:$0xf] %vm1172, %v1096
        %1226 = vst.msk [vmem:[%s257 + $0xd4] sm:$0xf] %vm1172, %v1097
        %1227 = vst.msk [vmem:[%s257 + $0xd8] sm:$0xf] %vm1172, %v1098
        %1228 = vst.msk [vmem:[%s257 + $0xdc] sm:$0xf] %vm1172, %v1099
        %1229 = vst.msk [vmem:[%s257 + $0xe0] sm:$0xf] %vm1172, %v1100
        %1230 = vst.msk [vmem:[%s257 + $0xe4] sm:$0xf] %vm1172, %v1101
        %1231 = vst.msk [vmem:[%s257 + $0xe8] sm:$0xf] %vm1172, %v1102
        %1232 = vst.msk [vmem:[%s257 + $0xec] sm:$0xf] %vm1172, %v1103
        %1233 = vst.msk [vmem:[%s257 + $0xf0] sm:$0xf] %vm1172, %v1104
        %1234 = vst.msk [vmem:[%s257 + $0xf4] sm:$0xf] %vm1172, %v1105
        %1235 = vst.msk [vmem:[%s257 + $0xf8] sm:$0xf] %vm1172, %v1106
        %1236 = vst.msk [vmem:[%s257 + $0xfc] sm:$0xf] %vm1172, %v1107
        %p1237 = scmp.eq.s32.totalorder %s28, 0
        // Predicated region
        $region33: #{tpu_custom_call.1} parent=31 // pred_check
          %p1238 = pneg %p1237
        $region34: #{tpu_custom_call.1} parent=31 // pred_check_branch
          %1240 = sbr.rel (%p1238) target = $region36
        $region35: #{tpu_custom_call.1} parent=31 // pred_region
          %vm1241 = vcmask 253952
          %1242 = vst.msk [vmem:[%s263] sm:$0x1] %vm1241, 0.0
          %1243 = vst.msk [vmem:[%s269] sm:$0x1] %vm1241, 0.0
        $region36: #{tpu_custom_call.1} parent=31 // pred_fallthru
          _
        %s1244 = smul.u32 %s28, 512
        %v1245 = vlaneseq
        %v1246 = vshrl.u32 %v1245, 7
        %v1247 = vadd.s32 %v1246, 8
        %v1248 = vadd.s32 %v1246, 16
        %v1249 = vadd.s32 %v1246, 24
        %v1250 = vadd.s32 %v1246, 32
        %v1251 = vadd.s32 %v1246, 40
        %v1252 = vadd.s32 %v1246, 48
        %v1253 = vadd.s32 %v1246, 56
        %v1254 = vadd.s32 %v1246, 64
        %v1255 = vadd.s32 %v1246, 72
        %v1256 = vadd.s32 %v1246, 80
        %v1257 = vadd.s32 %v1246, 88
        %v1258 = vadd.s32 %v1246, 96
        %v1259 = vadd.s32 %v1246, 104
        %v1260 = vadd.s32 %v1246, 112
        %v1261 = vadd.s32 %v1246, 120
        %v1262 = vadd.s32 %v1246, 128
        %v1263 = vadd.s32 %v1246, 136
        %v1264 = vadd.s32 %v1246, 144
        %v1265 = vadd.s32 %v1246, 152
        %v1266 = vadd.s32 %v1246, 160
        %v1267 = vadd.s32 %v1246, 168
        %v1268 = vadd.s32 %v1246, 176
        %v1269 = vadd.s32 %v1246, 184
        %v1270 = vadd.s32 %v1246, 192
        %v1271 = vadd.s32 %v1246, 200
        %v1272 = vadd.s32 %v1246, 208
        %v1273 = vadd.s32 %v1246, 216
        %v1274 = vadd.s32 %v1246, 224
        %v1275 = vadd.s32 %v1246, 232
        %v1276 = vadd.s32 %v1246, 240
        %v1277 = vadd.s32 %v1246, 248
        %v1278 = vadd.s32 %v1246, 256
        %v1279 = vadd.s32 %v1246, 264
        %v1280 = vadd.s32 %v1246, 272
        %v1281 = vadd.s32 %v1246, 280
        %v1282 = vadd.s32 %v1246, 288
        %v1283 = vadd.s32 %v1246, 296
        %v1284 = vadd.s32 %v1246, 304
        %v1285 = vadd.s32 %v1246, 312
        %v1286 = vadd.s32 %v1246, 320
        %v1287 = vadd.s32 %v1246, 328
        %v1288 = vadd.s32 %v1246, 336
        %v1289 = vadd.s32 %v1246, 344
        %v1290 = vadd.s32 %v1246, 352
        %v1291 = vadd.s32 %v1246, 360
        %v1292 = vadd.s32 %v1246, 368
        %v1293 = vadd.s32 %v1246, 376
        %v1294 = vadd.s32 %v1246, 384
        %v1295 = vadd.s32 %v1246, 392
        %v1296 = vadd.s32 %v1246, 400
        %v1297 = vadd.s32 %v1246, 408
        %v1298 = vadd.s32 %v1246, 416
        %v1299 = vadd.s32 %v1246, 424
        %v1300 = vadd.s32 %v1246, 432
        %v1301 = vadd.s32 %v1246, 440
        %v1302 = vadd.s32 %v1246, 448
        %v1303 = vadd.s32 %v1246, 456
        %v1304 = vadd.s32 %v1246, 464
        %v1305 = vadd.s32 %v1246, 472
        %v1306 = vadd.s32 %v1246, 480
        %v1307 = vadd.s32 %v1246, 488
        %v1308 = vadd.s32 %v1246, 496
        %v1309 = vadd.s32 %v1246, 504
        %v1310 = vstv %s1244
        %v1311 = vadd.s32 %v1310, %v1246
        %v1312 = vadd.s32 %v1310, %v1247
        %v1313 = vadd.s32 %v1310, %v1248
        %v1314 = vadd.s32 %v1310, %v1249
        %v1315 = vadd.s32 %v1310, %v1250
        %v1316 = vadd.s32 %v1310, %v1251
        %v1317 = vadd.s32 %v1310, %v1252
        %v1318 = vadd.s32 %v1310, %v1253
        %v1319 = vadd.s32 %v1310, %v1254
        %v1320 = vadd.s32 %v1310, %v1255
        %v1321 = vadd.s32 %v1310, %v1256
        %v1322 = vadd.s32 %v1310, %v1257
        %v1323 = vadd.s32 %v1310, %v1258
        %v1324 = vadd.s32 %v1310, %v1259
        %v1325 = vadd.s32 %v1310, %v1260
        %v1326 = vadd.s32 %v1310, %v1261
        %v1327 = vadd.s32 %v1310, %v1262
        %v1328 = vadd.s32 %v1310, %v1263
        %v1329 = vadd.s32 %v1310, %v1264
        %v1330 = vadd.s32 %v1310, %v1265
        %v1331 = vadd.s32 %v1310, %v1266
        %v1332 = vadd.s32 %v1310, %v1267
        %v1333 = vadd.s32 %v1310, %v1268
        %v1334 = vadd.s32 %v1310, %v1269
        %v1335 = vadd.s32 %v1310, %v1270
        %v1336 = vadd.s32 %v1310, %v1271
        %v1337 = vadd.s32 %v1310, %v1272
        %v1338 = vadd.s32 %v1310, %v1273
        %v1339 = vadd.s32 %v1310, %v1274
        %v1340 = vadd.s32 %v1310, %v1275
        %v1341 = vadd.s32 %v1310, %v1276
        %v1342 = vadd.s32 %v1310, %v1277
        %v1343 = vadd.s32 %v1310, %v1278
        %v1344 = vadd.s32 %v1310, %v1279
        %v1345 = vadd.s32 %v1310, %v1280
        %v1346 = vadd.s32 %v1310, %v1281
        %v1347 = vadd.s32 %v1310, %v1282
        %v1348 = vadd.s32 %v1310, %v1283
        %v1349 = vadd.s32 %v1310, %v1284
        %v1350 = vadd.s32 %v1310, %v1285
        %v1351 = vadd.s32 %v1310, %v1286
        %v1352 = vadd.s32 %v1310, %v1287
        %v1353 = vadd.s32 %v1310, %v1288
        %v1354 = vadd.s32 %v1310, %v1289
        %v1355 = vadd.s32 %v1310, %v1290
        %v1356 = vadd.s32 %v1310, %v1291
        %v1357 = vadd.s32 %v1310, %v1292
        %v1358 = vadd.s32 %v1310, %v1293
        %v1359 = vadd.s32 %v1310, %v1294
        %v1360 = vadd.s32 %v1310, %v1295
        %v1361 = vadd.s32 %v1310, %v1296
        %v1362 = vadd.s32 %v1310, %v1297
        %v1363 = vadd.s32 %v1310, %v1298
        %v1364 = vadd.s32 %v1310, %v1299
        %v1365 = vadd.s32 %v1310, %v1300
        %v1366 = vadd.s32 %v1310, %v1301
        %v1367 = vadd.s32 %v1310, %v1302
        %v1368 = vadd.s32 %v1310, %v1303
        %v1369 = vadd.s32 %v1310, %v1304
        %v1370 = vadd.s32 %v1310, %v1305
        %v1371 = vadd.s32 %v1310, %v1306
        %v1372 = vadd.s32 %v1310, %v1307
        %v1373 = vadd.s32 %v1310, %v1308
        %v1374 = vadd.s32 %v1310, %v1309
        %vm1375 = vcmp.lt.s32.totalorder %v1311, 1600
        %vm1376 = vcmp.lt.s32.totalorder %v1312, 1600
        %vm1377 = vcmp.lt.s32.totalorder %v1313, 1600
        %vm1378 = vcmp.lt.s32.totalorder %v1314, 1600
        %vm1379 = vcmp.lt.s32.totalorder %v1315, 1600
        %vm1380 = vcmp.lt.s32.totalorder %v1316, 1600
        %vm1381 = vcmp.lt.s32.totalorder %v1317, 1600
        %vm1382 = vcmp.lt.s32.totalorder %v1318, 1600
        %vm1383 = vcmp.lt.s32.totalorder %v1319, 1600
        %vm1384 = vcmp.lt.s32.totalorder %v1320, 1600
        %vm1385 = vcmp.lt.s32.totalorder %v1321, 1600
        %vm1386 = vcmp.lt.s32.totalorder %v1322, 1600
        %vm1387 = vcmp.lt.s32.totalorder %v1323, 1600
        %vm1388 = vcmp.lt.s32.totalorder %v1324, 1600
        %vm1389 = vcmp.lt.s32.totalorder %v1325, 1600
        %vm1390 = vcmp.lt.s32.totalorder %v1326, 1600
        %vm1391 = vcmp.lt.s32.totalorder %v1327, 1600
        %vm1392 = vcmp.lt.s32.totalorder %v1328, 1600
        %vm1393 = vcmp.lt.s32.totalorder %v1329, 1600
        %vm1394 = vcmp.lt.s32.totalorder %v1330, 1600
        %vm1395 = vcmp.lt.s32.totalorder %v1331, 1600
        %vm1396 = vcmp.lt.s32.totalorder %v1332, 1600
        %vm1397 = vcmp.lt.s32.totalorder %v1333, 1600
        %vm1398 = vcmp.lt.s32.totalorder %v1334, 1600
        %vm1399 = vcmp.lt.s32.totalorder %v1335, 1600
        %vm1400 = vcmp.lt.s32.totalorder %v1336, 1600
        %vm1401 = vcmp.lt.s32.totalorder %v1337, 1600
        %vm1402 = vcmp.lt.s32.totalorder %v1338, 1600
        %vm1403 = vcmp.lt.s32.totalorder %v1339, 1600
        %vm1404 = vcmp.lt.s32.totalorder %v1340, 1600
        %vm1405 = vcmp.lt.s32.totalorder %v1341, 1600
        %vm1406 = vcmp.lt.s32.totalorder %v1342, 1600
        %vm1407 = vcmp.lt.s32.totalorder %v1343, 1600
        %vm1408 = vcmp.lt.s32.totalorder %v1344, 1600
        %vm1409 = vcmp.lt.s32.totalorder %v1345, 1600
        %vm1410 = vcmp.lt.s32.totalorder %v1346, 1600
        %vm1411 = vcmp.lt.s32.totalorder %v1347, 1600
        %vm1412 = vcmp.lt.s32.totalorder %v1348, 1600
        %vm1413 = vcmp.lt.s32.totalorder %v1349, 1600
        %vm1414 = vcmp.lt.s32.totalorder %v1350, 1600
        %vm1415 = vcmp.lt.s32.totalorder %v1351, 1600
        %vm1416 = vcmp.lt.s32.totalorder %v1352, 1600
        %vm1417 = vcmp.lt.s32.totalorder %v1353, 1600
        %vm1418 = vcmp.lt.s32.totalorder %v1354, 1600
        %vm1419 = vcmp.lt.s32.totalorder %v1355, 1600
        %vm1420 = vcmp.lt.s32.totalorder %v1356, 1600
        %vm1421 = vcmp.lt.s32.totalorder %v1357, 1600
        %vm1422 = vcmp.lt.s32.totalorder %v1358, 1600
        %vm1423 = vcmp.lt.s32.totalorder %v1359, 1600
        %vm1424 = vcmp.lt.s32.totalorder %v1360, 1600
        %vm1425 = vcmp.lt.s32.totalorder %v1361, 1600
        %vm1426 = vcmp.lt.s32.totalorder %v1362, 1600
        %vm1427 = vcmp.lt.s32.totalorder %v1363, 1600
        %vm1428 = vcmp.lt.s32.totalorder %v1364, 1600
        %vm1429 = vcmp.lt.s32.totalorder %v1365, 1600
        %vm1430 = vcmp.lt.s32.totalorder %v1366, 1600
        %vm1431 = vcmp.lt.s32.totalorder %v1367, 1600
        %vm1432 = vcmp.lt.s32.totalorder %v1368, 1600
        %vm1433 = vcmp.lt.s32.totalorder %v1369, 1600
        %vm1434 = vcmp.lt.s32.totalorder %v1370, 1600
        %vm1435 = vcmp.lt.s32.totalorder %v1371, 1600
        %vm1436 = vcmp.lt.s32.totalorder %v1372, 1600
        %vm1437 = vcmp.lt.s32.totalorder %v1373, 1600
        %vm1438 = vcmp.lt.s32.totalorder %v1374, 1600
        %v1439 = vsel %vm1375, %v662, 0.0
        %v1440 = vsel %vm1376, %v665, 0.0
        %v1441 = vsel %vm1377, %v670, 0.0
        %v1442 = vsel %vm1378, %v673, 0.0
        %v1443 = vsel %vm1379, %v678, 0.0
        %v1444 = vsel %vm1380, %v681, 0.0
        %v1445 = vsel %vm1381, %v686, 0.0
        %v1446 = vsel %vm1382, %v689, 0.0
        %v1447 = vsel %vm1383, %v694, 0.0
        %v1448 = vsel %vm1384, %v697, 0.0
        %v1449 = vsel %vm1385, %v702, 0.0
        %v1450 = vsel %vm1386, %v705, 0.0
        %v1451 = vsel %vm1387, %v710, 0.0
        %v1452 = vsel %vm1388, %v713, 0.0
        %v1453 = vsel %vm1389, %v718, 0.0
        %v1454 = vsel %vm1390, %v721, 0.0
        %v1455 = vsel %vm1391, %v726, 0.0
        %v1456 = vsel %vm1392, %v729, 0.0
        %v1457 = vsel %vm1393, %v734, 0.0
        %v1458 = vsel %vm1394, %v737, 0.0
        %v1459 = vsel %vm1395, %v742, 0.0
        %v1460 = vsel %vm1396, %v745, 0.0
        %v1461 = vsel %vm1397, %v750, 0.0
        %v1462 = vsel %vm1398, %v753, 0.0
        %v1463 = vsel %vm1399, %v758, 0.0
        %v1464 = vsel %vm1400, %v761, 0.0
        %v1465 = vsel %vm1401, %v766, 0.0
        %v1466 = vsel %vm1402, %v769, 0.0
        %v1467 = vsel %vm1403, %v774, 0.0
        %v1468 = vsel %vm1404, %v777, 0.0
        %v1469 = vsel %vm1405, %v782, 0.0
        %v1470 = vsel %vm1406, %v785, 0.0
        %v1471 = vsel %vm1407, %v790, 0.0
        %v1472 = vsel %vm1408, %v793, 0.0
        %v1473 = vsel %vm1409, %v798, 0.0
        %v1474 = vsel %vm1410, %v801, 0.0
        %v1475 = vsel %vm1411, %v806, 0.0
        %v1476 = vsel %vm1412, %v809, 0.0
        %v1477 = vsel %vm1413, %v814, 0.0
        %v1478 = vsel %vm1414, %v817, 0.0
        %v1479 = vsel %vm1415, %v822, 0.0
        %v1480 = vsel %vm1416, %v825, 0.0
        %v1481 = vsel %vm1417, %v830, 0.0
        %v1482 = vsel %vm1418, %v833, 0.0
        %v1483 = vsel %vm1419, %v838, 0.0
        %v1484 = vsel %vm1420, %v841, 0.0
        %v1485 = vsel %vm1421, %v846, 0.0
        %v1486 = vsel %vm1422, %v849, 0.0
        %v1487 = vsel %vm1423, %v854, 0.0
        %v1488 = vsel %vm1424, %v857, 0.0
        %v1489 = vsel %vm1425, %v862, 0.0
        %v1490 = vsel %vm1426, %v865, 0.0
        %v1491 = vsel %vm1427, %v870, 0.0
        %v1492 = vsel %vm1428, %v873, 0.0
        %v1493 = vsel %vm1429, %v878, 0.0
        %v1494 = vsel %vm1430, %v881, 0.0
        %v1495 = vsel %vm1431, %v886, 0.0
        %v1496 = vsel %vm1432, %v889, 0.0
        %v1497 = vsel %vm1433, %v894, 0.0
        %v1498 = vsel %vm1434, %v897, 0.0
        %v1499 = vsel %vm1435, %v902, 0.0
        %v1500 = vsel %vm1436, %v905, 0.0
        %v1501 = vsel %vm1437, %v910, 0.0
        %v1502 = vsel %vm1438, %v913, 0.0
        %v1503 = vld [vmem:[%s263] sm:$0x1]
        %vm1504 = vcmask 261120
        %v1505 = vsel %vm1504, %v1439, 0.0
        %v1506 = vsel %vm1504, %v1440, 0.0
        %v1507 = vadd.f32 %v1505, %v1506
        %v1508 = vsel %vm1504, %v1441, 0.0
        %v1509 = vadd.f32 %v1507, %v1508
        %v1510 = vsel %vm1504, %v1442, 0.0
        %v1511 = vadd.f32 %v1509, %v1510
        %v1512 = vsel %vm1504, %v1443, 0.0
        %v1513 = vadd.f32 %v1511, %v1512
        %v1514 = vsel %vm1504, %v1444, 0.0
        %v1515 = vadd.f32 %v1513, %v1514
        %v1516 = vsel %vm1504, %v1445, 0.0
        %v1517 = vadd.f32 %v1515, %v1516
        %v1518 = vsel %vm1504, %v1446, 0.0
        %v1519 = vadd.f32 %v1517, %v1518
        %v1520 = vsel %vm1504, %v1447, 0.0
        %v1521 = vadd.f32 %v1519, %v1520
        %v1522 = vsel %vm1504, %v1448, 0.0
        %v1523 = vadd.f32 %v1521, %v1522
        %v1524 = vsel %vm1504, %v1449, 0.0
        %v1525 = vadd.f32 %v1523, %v1524
        %v1526 = vsel %vm1504, %v1450, 0.0
        %v1527 = vadd.f32 %v1525, %v1526
        %v1528 = vsel %vm1504, %v1451, 0.0
        %v1529 = vadd.f32 %v1527, %v1528
        %v1530 = vsel %vm1504, %v1452, 0.0
        %v1531 = vadd.f32 %v1529, %v1530
        %v1532 = vsel %vm1504, %v1453, 0.0
        %v1533 = vadd.f32 %v1531, %v1532
        %v1534 = vsel %vm1504, %v1454, 0.0
        %v1535 = vadd.f32 %v1533, %v1534
        %v1536 = vsel %vm1504, %v1455, 0.0
        %v1537 = vadd.f32 %v1535, %v1536
        %v1538 = vsel %vm1504, %v1456, 0.0
        %v1539 = vadd.f32 %v1537, %v1538
        %v1540 = vsel %vm1504, %v1457, 0.0
        %v1541 = vadd.f32 %v1539, %v1540
        %v1542 = vsel %vm1504, %v1458, 0.0
        %v1543 = vadd.f32 %v1541, %v1542
        %v1544 = vsel %vm1504, %v1459, 0.0
        %v1545 = vadd.f32 %v1543, %v1544
        %v1546 = vsel %vm1504, %v1460, 0.0
        %v1547 = vadd.f32 %v1545, %v1546
        %v1548 = vsel %vm1504, %v1461, 0.0
        %v1549 = vadd.f32 %v1547, %v1548
        %v1550 = vsel %vm1504, %v1462, 0.0
        %v1551 = vadd.f32 %v1549, %v1550
        %v1552 = vsel %vm1504, %v1463, 0.0
        %v1553 = vadd.f32 %v1551, %v1552
        %v1554 = vsel %vm1504, %v1464, 0.0
        %v1555 = vadd.f32 %v1553, %v1554
        %v1556 = vsel %vm1504, %v1465, 0.0
        %v1557 = vadd.f32 %v1555, %v1556
        %v1558 = vsel %vm1504, %v1466, 0.0
        %v1559 = vadd.f32 %v1557, %v1558
        %v1560 = vsel %vm1504, %v1467, 0.0
        %v1561 = vadd.f32 %v1559, %v1560
        %v1562 = vsel %vm1504, %v1468, 0.0
        %v1563 = vadd.f32 %v1561, %v1562
        %v1564 = vsel %vm1504, %v1469, 0.0
        %v1565 = vadd.f32 %v1563, %v1564
        %v1566 = vsel %vm1504, %v1470, 0.0
        %v1567 = vadd.f32 %v1565, %v1566
        %v1568 = vsel %vm1504, %v1471, 0.0
        %v1569 = vadd.f32 %v1567, %v1568
        %v1570 = vsel %vm1504, %v1472, 0.0
        %v1571 = vadd.f32 %v1569, %v1570
        %v1572 = vsel %vm1504, %v1473, 0.0
        %v1573 = vadd.f32 %v1571, %v1572
        %v1574 = vsel %vm1504, %v1474, 0.0
        %v1575 = vadd.f32 %v1573, %v1574
        %v1576 = vsel %vm1504, %v1475, 0.0
        %v1577 = vadd.f32 %v1575, %v1576
        %v1578 = vsel %vm1504, %v1476, 0.0
        %v1579 = vadd.f32 %v1577, %v1578
        %v1580 = vsel %vm1504, %v1477, 0.0
        %v1581 = vadd.f32 %v1579, %v1580
        %v1582 = vsel %vm1504, %v1478, 0.0
        %v1583 = vadd.f32 %v1581, %v1582
        %v1584 = vsel %vm1504, %v1479, 0.0
        %v1585 = vadd.f32 %v1583, %v1584
        %v1586 = vsel %vm1504, %v1480, 0.0
        %v1587 = vadd.f32 %v1585, %v1586
        %v1588 = vsel %vm1504, %v1481, 0.0
        %v1589 = vadd.f32 %v1587, %v1588
        %v1590 = vsel %vm1504, %v1482, 0.0
        %v1591 = vadd.f32 %v1589, %v1590
        %v1592 = vsel %vm1504, %v1483, 0.0
        %v1593 = vadd.f32 %v1591, %v1592
        %v1594 = vsel %vm1504, %v1484, 0.0
        %v1595 = vadd.f32 %v1593, %v1594
        %v1596 = vsel %vm1504, %v1485, 0.0
        %v1597 = vadd.f32 %v1595, %v1596
        %v1598 = vsel %vm1504, %v1486, 0.0
        %v1599 = vadd.f32 %v1597, %v1598
        %v1600 = vsel %vm1504, %v1487, 0.0
        %v1601 = vadd.f32 %v1599, %v1600
        %v1602 = vsel %vm1504, %v1488, 0.0
        %v1603 = vadd.f32 %v1601, %v1602
        %v1604 = vsel %vm1504, %v1489, 0.0
        %v1605 = vadd.f32 %v1603, %v1604
        %v1606 = vsel %vm1504, %v1490, 0.0
        %v1607 = vadd.f32 %v1605, %v1606
        %v1608 = vsel %vm1504, %v1491, 0.0
        %v1609 = vadd.f32 %v1607, %v1608
        %v1610 = vsel %vm1504, %v1492, 0.0
        %v1611 = vadd.f32 %v1609, %v1610
        %v1612 = vsel %vm1504, %v1493, 0.0
        %v1613 = vadd.f32 %v1611, %v1612
        %v1614 = vsel %vm1504, %v1494, 0.0
        %v1615 = vadd.f32 %v1613, %v1614
        %v1616 = vsel %vm1504, %v1495, 0.0
        %v1617 = vadd.f32 %v1615, %v1616
        %v1618 = vsel %vm1504, %v1496, 0.0
        %v1619 = vadd.f32 %v1617, %v1618
        %v1620 = vsel %vm1504, %v1497, 0.0
        %v1621 = vadd.f32 %v1619, %v1620
        %v1622 = vsel %vm1504, %v1498, 0.0
        %v1623 = vadd.f32 %v1621, %v1622
        %v1624 = vsel %vm1504, %v1499, 0.0
        %v1625 = vadd.f32 %v1623, %v1624
        %v1626 = vsel %vm1504, %v1500, 0.0
        %v1627 = vadd.f32 %v1625, %v1626
        %v1628 = vsel %vm1504, %v1501, 0.0
        %v1629 = vadd.f32 %v1627, %v1628
        %v1630 = vsel %vm1504, %v1502, 0.0
        %v1631 = vadd.f32 %v1629, %v1630
        %v1632 = vrot.slane %v1631, 4
        %v1633 = vadd.f32 %v1631, %v1632
        %v1634 = vrot.slane %v1633, 2
        %v1635 = vadd.f32 %v1633, %v1634
        %v1636 = vrot.slane %v1635, 1
        %v1637 = vadd.f32 %v1635, %v1636
        %v1638 = vadd.f32 %v1503, %v1637
        %vm1639 = vcmask 253952
        %1640 = vst.msk [vmem:[%s263] sm:$0x1] %vm1639, %v1638
        %v1641 = vld [vmem:[%s269] sm:$0x1]
        %v1642 = vmul.f32 %v1439, %v1439
        %v1643 = vmul.f32 %v1440, %v1440
        %v1644 = vmul.f32 %v1441, %v1441
        %v1645 = vmul.f32 %v1442, %v1442
        %v1646 = vmul.f32 %v1443, %v1443
        %v1647 = vmul.f32 %v1444, %v1444
        %v1648 = vmul.f32 %v1445, %v1445
        %v1649 = vmul.f32 %v1446, %v1446
        %v1650 = vmul.f32 %v1447, %v1447
        %v1651 = vmul.f32 %v1448, %v1448
        %v1652 = vmul.f32 %v1449, %v1449
        %v1653 = vmul.f32 %v1450, %v1450
        %v1654 = vmul.f32 %v1451, %v1451
        %v1655 = vmul.f32 %v1452, %v1452
        %v1656 = vmul.f32 %v1453, %v1453
        %v1657 = vmul.f32 %v1454, %v1454
        %v1658 = vmul.f32 %v1455, %v1455
        %v1659 = vmul.f32 %v1456, %v1456
        %v1660 = vmul.f32 %v1457, %v1457
        %v1661 = vmul.f32 %v1458, %v1458
        %v1662 = vmul.f32 %v1459, %v1459
        %v1663 = vmul.f32 %v1460, %v1460
        %v1664 = vmul.f32 %v1461, %v1461
        %v1665 = vmul.f32 %v1462, %v1462
        %v1666 = vmul.f32 %v1463, %v1463
        %v1667 = vmul.f32 %v1464, %v1464
        %v1668 = vmul.f32 %v1465, %v1465
        %v1669 = vmul.f32 %v1466, %v1466
        %v1670 = vmul.f32 %v1467, %v1467
        %v1671 = vmul.f32 %v1468, %v1468
        %v1672 = vmul.f32 %v1469, %v1469
        %v1673 = vmul.f32 %v1470, %v1470
        %v1674 = vmul.f32 %v1471, %v1471
        %v1675 = vmul.f32 %v1472, %v1472
        %v1676 = vmul.f32 %v1473, %v1473
        %v1677 = vmul.f32 %v1474, %v1474
        %v1678 = vmul.f32 %v1475, %v1475
        %v1679 = vmul.f32 %v1476, %v1476
        %v1680 = vmul.f32 %v1477, %v1477
        %v1681 = vmul.f32 %v1478, %v1478
        %v1682 = vmul.f32 %v1479, %v1479
        %v1683 = vmul.f32 %v1480, %v1480
        %v1684 = vmul.f32 %v1481, %v1481
        %v1685 = vmul.f32 %v1482, %v1482
        %v1686 = vmul.f32 %v1483, %v1483
        %v1687 = vmul.f32 %v1484, %v1484
        %v1688 = vmul.f32 %v1485, %v1485
        %v1689 = vmul.f32 %v1486, %v1486
        %v1690 = vmul.f32 %v1487, %v1487
        %v1691 = vmul.f32 %v1488, %v1488
        %v1692 = vmul.f32 %v1489, %v1489
        %v1693 = vmul.f32 %v1490, %v1490
        %v1694 = vmul.f32 %v1491, %v1491
        %v1695 = vmul.f32 %v1492, %v1492
        %v1696 = vmul.f32 %v1493, %v1493
        %v1697 = vmul.f32 %v1494, %v1494
        %v1698 = vmul.f32 %v1495, %v1495
        %v1699 = vmul.f32 %v1496, %v1496
        %v1700 = vmul.f32 %v1497, %v1497
        %v1701 = vmul.f32 %v1498, %v1498
        %v1702 = vmul.f32 %v1499, %v1499
        %v1703 = vmul.f32 %v1500, %v1500
        %v1704 = vmul.f32 %v1501, %v1501
        %v1705 = vmul.f32 %v1502, %v1502
        %v1706 = vsel %vm1504, %v1642, 0.0
        %v1707 = vsel %vm1504, %v1643, 0.0
        %v1708 = vadd.f32 %v1706, %v1707
        %v1709 = vsel %vm1504, %v1644, 0.0
        %v1710 = vadd.f32 %v1708, %v1709
        %v1711 = vsel %vm1504, %v1645, 0.0
        %v1712 = vadd.f32 %v1710, %v1711
        %v1713 = vsel %vm1504, %v1646, 0.0
        %v1714 = vadd.f32 %v1712, %v1713
        %v1715 = vsel %vm1504, %v1647, 0.0
        %v1716 = vadd.f32 %v1714, %v1715
        %v1717 = vsel %vm1504, %v1648, 0.0
        %v1718 = vadd.f32 %v1716, %v1717
        %v1719 = vsel %vm1504, %v1649, 0.0
        %v1720 = vadd.f32 %v1718, %v1719
        %v1721 = vsel %vm1504, %v1650, 0.0
        %v1722 = vadd.f32 %v1720, %v1721
        %v1723 = vsel %vm1504, %v1651, 0.0
        %v1724 = vadd.f32 %v1722, %v1723
        %v1725 = vsel %vm1504, %v1652, 0.0
        %v1726 = vadd.f32 %v1724, %v1725
        %v1727 = vsel %vm1504, %v1653, 0.0
        %v1728 = vadd.f32 %v1726, %v1727
        %v1729 = vsel %vm1504, %v1654, 0.0
        %v1730 = vadd.f32 %v1728, %v1729
        %v1731 = vsel %vm1504, %v1655, 0.0
        %v1732 = vadd.f32 %v1730, %v1731
        %v1733 = vsel %vm1504, %v1656, 0.0
        %v1734 = vadd.f32 %v1732, %v1733
        %v1735 = vsel %vm1504, %v1657, 0.0
        %v1736 = vadd.f32 %v1734, %v1735
        %v1737 = vsel %vm1504, %v1658, 0.0
        %v1738 = vadd.f32 %v1736, %v1737
        %v1739 = vsel %vm1504, %v1659, 0.0
        %v1740 = vadd.f32 %v1738, %v1739
        %v1741 = vsel %vm1504, %v1660, 0.0
        %v1742 = vadd.f32 %v1740, %v1741
        %v1743 = vsel %vm1504, %v1661, 0.0
        %v1744 = vadd.f32 %v1742, %v1743
        %v1745 = vsel %vm1504, %v1662, 0.0
        %v1746 = vadd.f32 %v1744, %v1745
        %v1747 = vsel %vm1504, %v1663, 0.0
        %v1748 = vadd.f32 %v1746, %v1747
        %v1749 = vsel %vm1504, %v1664, 0.0
        %v1750 = vadd.f32 %v1748, %v1749
        %v1751 = vsel %vm1504, %v1665, 0.0
        %v1752 = vadd.f32 %v1750, %v1751
        %v1753 = vsel %vm1504, %v1666, 0.0
        %v1754 = vadd.f32 %v1752, %v1753
        %v1755 = vsel %vm1504, %v1667, 0.0
        %v1756 = vadd.f32 %v1754, %v1755
        %v1757 = vsel %vm1504, %v1668, 0.0
        %v1758 = vadd.f32 %v1756, %v1757
        %v1759 = vsel %vm1504, %v1669, 0.0
        %v1760 = vadd.f32 %v1758, %v1759
        %v1761 = vsel %vm1504, %v1670, 0.0
        %v1762 = vadd.f32 %v1760, %v1761
        %v1763 = vsel %vm1504, %v1671, 0.0
        %v1764 = vadd.f32 %v1762, %v1763
        %v1765 = vsel %vm1504, %v1672, 0.0
        %v1766 = vadd.f32 %v1764, %v1765
        %v1767 = vsel %vm1504, %v1673, 0.0
        %v1768 = vadd.f32 %v1766, %v1767
        %v1769 = vsel %vm1504, %v1674, 0.0
        %v1770 = vadd.f32 %v1768, %v1769
        %v1771 = vsel %vm1504, %v1675, 0.0
        %v1772 = vadd.f32 %v1770, %v1771
        %v1773 = vsel %vm1504, %v1676, 0.0
        %v1774 = vadd.f32 %v1772, %v1773
        %v1775 = vsel %vm1504, %v1677, 0.0
        %v1776 = vadd.f32 %v1774, %v1775
        %v1777 = vsel %vm1504, %v1678, 0.0
        %v1778 = vadd.f32 %v1776, %v1777
        %v1779 = vsel %vm1504, %v1679, 0.0
        %v1780 = vadd.f32 %v1778, %v1779
        %v1781 = vsel %vm1504, %v1680, 0.0
        %v1782 = vadd.f32 %v1780, %v1781
        %v1783 = vsel %vm1504, %v1681, 0.0
        %v1784 = vadd.f32 %v1782, %v1783
        %v1785 = vsel %vm1504, %v1682, 0.0
        %v1786 = vadd.f32 %v1784, %v1785
        %v1787 = vsel %vm1504, %v1683, 0.0
        %v1788 = vadd.f32 %v1786, %v1787
        %v1789 = vsel %vm1504, %v1684, 0.0
        %v1790 = vadd.f32 %v1788, %v1789
        %v1791 = vsel %vm1504, %v1685, 0.0
        %v1792 = vadd.f32 %v1790, %v1791
        %v1793 = vsel %vm1504, %v1686, 0.0
        %v1794 = vadd.f32 %v1792, %v1793
        %v1795 = vsel %vm1504, %v1687, 0.0
        %v1796 = vadd.f32 %v1794, %v1795
        %v1797 = vsel %vm1504, %v1688, 0.0
        %v1798 = vadd.f32 %v1796, %v1797
        %v1799 = vsel %vm1504, %v1689, 0.0
        %v1800 = vadd.f32 %v1798, %v1799
        %v1801 = vsel %vm1504, %v1690, 0.0
        %v1802 = vadd.f32 %v1800, %v1801
        %v1803 = vsel %vm1504, %v1691, 0.0
        %v1804 = vadd.f32 %v1802, %v1803
        %v1805 = vsel %vm1504, %v1692, 0.0
        %v1806 = vadd.f32 %v1804, %v1805
        %v1807 = vsel %vm1504, %v1693, 0.0
        %v1808 = vadd.f32 %v1806, %v1807
        %v1809 = vsel %vm1504, %v1694, 0.0
        %v1810 = vadd.f32 %v1808, %v1809
        %v1811 = vsel %vm1504, %v1695, 0.0
        %v1812 = vadd.f32 %v1810, %v1811
        %v1813 = vsel %vm1504, %v1696, 0.0
        %v1814 = vadd.f32 %v1812, %v1813
        %v1815 = vsel %vm1504, %v1697, 0.0
        %v1816 = vadd.f32 %v1814, %v1815
        %v1817 = vsel %vm1504, %v1698, 0.0
        %v1818 = vadd.f32 %v1816, %v1817
        %v1819 = vsel %vm1504, %v1699, 0.0
        %v1820 = vadd.f32 %v1818, %v1819
        %v1821 = vsel %vm1504, %v1700, 0.0
        %v1822 = vadd.f32 %v1820, %v1821
        %v1823 = vsel %vm1504, %v1701, 0.0
        %v1824 = vadd.f32 %v1822, %v1823
        %v1825 = vsel %vm1504, %v1702, 0.0
        %v1826 = vadd.f32 %v1824, %v1825
        %v1827 = vsel %vm1504, %v1703, 0.0
        %v1828 = vadd.f32 %v1826, %v1827
        %v1829 = vsel %vm1504, %v1704, 0.0
        %v1830 = vadd.f32 %v1828, %v1829
        %v1831 = vsel %vm1504, %v1705, 0.0
        %v1832 = vadd.f32 %v1830, %v1831
        %v1833 = vrot.slane %v1832, 4
        %v1834 = vadd.f32 %v1832, %v1833
        %v1835 = vrot.slane %v1834, 2
        %v1836 = vadd.f32 %v1834, %v1835
        %v1837 = vrot.slane %v1836, 1
        %v1838 = vadd.f32 %v1836, %v1837
        %v1839 = vadd.f32 %v1641, %v1838
        %1840 = vst.msk [vmem:[%s269] sm:$0x1] %vm1639, %v1839
        %s1841 = sand.u32 %s115, 1
        %s1842 = sand.u32 %s115, 1
        %s1843 = smul.addr %s1842, 256
        %s1844 = scalar_lea.vmem [#allocation2], %s1843
        %s1845 = sand.u32 %s141, 1
        %s1846 = scalar_lea.sflag [#allocation4], %s1845
        %s1847 = sand.u32 %s141, 1
        %s1848 = scalar_lea.vmem [#allocation3], %s1847
        %s1849 = sand.u32 %s167, 1
        %s1850 = scalar_lea.sflag [#allocation6], %s1849
        %s1851 = sand.u32 %s167, 1
        %s1852 = scalar_lea.vmem [#allocation5], %s1851
        // Predicated region
        $region37: #{tpu_custom_call.1} parent=31 // pred_check
          %p1853 = pneg %p125
        $region38: #{tpu_custom_call.1} parent=31 // pred_check_branch
          %1855 = sbr.rel (%p1853) target = $region40
        $region39: #{tpu_custom_call.1} parent=31 // pred_region
          %s1856 = smul.u32 64, %s28
          %s1857 = ssub.s32 200, %s1856
          %p1858 = scmp.lt.s32.totalorder %s1857, 64
          %s1859 = scalar_select %p1858, %s1857, 64
          %s1860 = smul.u32 64, %s1859
          %p1861 = scmp.ne.s32.totalorder 0, %s1860
          %s1862 = smul.addr %s27, 200
          %s1863 = sadd.s32 %s1856, %s1862
          %s1864 = smul.addr %s1863, 4
          %s1865 = scalar_lea.vmem %s3, %s1864
          // Predicated region
          $region41: #{tpu_custom_call.1} parent=39 // pred_check
            %p1866 = pneg %p1861
          $region42: #{tpu_custom_call.1} parent=39 // pred_check_branch
            %1868 = sbr.rel (%p1866) target = $region44
          $region43: #{tpu_custom_call.1} parent=39 // pred_region
            // Predicated region
            $region45: #{tpu_custom_call.1} parent=43 // pred_check
              _
            $region46: #{tpu_custom_call.1} parent=43 // pred_check_branch
              %1870 = sbr.rel target = $region48
            $region47: #{tpu_custom_call.1} parent=43 // pred_region
              // Predicated region
              $region67: #{tpu_custom_call.1} parent=47 // pred_check
                _
              $region68: #{tpu_custom_call.1} parent=47 // pred_check_branch
                %2045 = sbr.rel (0) target = $region70
              $region69: #{tpu_custom_call.1} parent=47 // pred_region
                %s2047 = sshrl.u32 %s1859, 6
                // While loop
                $region71: #{tpu_custom_call.1} parent=69 // loop_pre_header
                  _
                $region72: #{tpu_custom_call.1} parent=69 // loop_header
                  %s2049 = sphi 0, %s2051
                  %p2050 = scmp.ge.s32.totalorder %s2049, %s2047
                  %s2054 = sphi 0, %s2187
                  %s2055 = sphi %s1844, %s2190
                  %s2056 = sphi %s1865, %s2191
                $region73: #{tpu_custom_call.1} parent=69 // loop_header_branch
                  %2053 = sbr.rel (%p2050) target = $region77
                $region74: #{tpu_custom_call.1} parent=69 // loop_body
                  %v2057 = vld [vmem:[%s2055] sm:$0xf]
                  %2058 = vst [vmem:[%s2056] sm:$0xf] %v2057
                  %v2059 = vld [vmem:[%s2055 + $0x4] sm:$0xf]
                  %2060 = vst [vmem:[%s2056 + $0x4] sm:$0xf] %v2059
                  %v2061 = vld [vmem:[%s2055 + $0x8] sm:$0xf]
                  %2062 = vst [vmem:[%s2056 + $0x8] sm:$0xf] %v2061
                  %v2063 = vld [vmem:[%s2055 + $0xc] sm:$0xf]
                  %2064 = vst [vmem:[%s2056 + $0xc] sm:$0xf] %v2063
                  %v2065 = vld [vmem:[%s2055 + $0x10] sm:$0xf]
                  %2066 = vst [vmem:[%s2056 + $0x10] sm:$0xf] %v2065
                  %v2067 = vld [vmem:[%s2055 + $0x14] sm:$0xf]
                  %2068 = vst [vmem:[%s2056 + $0x14] sm:$0xf] %v2067
                  %v2069 = vld [vmem:[%s2055 + $0x18] sm:$0xf]
                  %2070 = vst [vmem:[%s2056 + $0x18] sm:$0xf] %v2069
                  %v2071 = vld [vmem:[%s2055 + $0x1c] sm:$0xf]
                  %2072 = vst [vmem:[%s2056 + $0x1c] sm:$0xf] %v2071
                  %v2073 = vld [vmem:[%s2055 + $0x20] sm:$0xf]
                  %2074 = vst [vmem:[%s2056 + $0x20] sm:$0xf] %v2073
                  %v2075 = vld [vmem:[%s2055 + $0x24] sm:$0xf]
                  %2076 = vst [vmem:[%s2056 + $0x24] sm:$0xf] %v2075
                  %v2077 = vld [vmem:[%s2055 + $0x28] sm:$0xf]
                  %2078 = vst [vmem:[%s2056 + $0x28] sm:$0xf] %v2077
                  %v2079 = vld [vmem:[%s2055 + $0x2c] sm:$0xf]
                  %2080 = vst [vmem:[%s2056 + $0x2c] sm:$0xf] %v2079
                  %v2081 = vld [vmem:[%s2055 + $0x30] sm:$0xf]
                  %2082 = vst [vmem:[%s2056 + $0x30] sm:$0xf] %v2081
                  %v2083 = vld [vmem:[%s2055 + $0x34] sm:$0xf]
                  %2084 = vst [vmem:[%s2056 + $0x34] sm:$0xf] %v2083
                  %v2085 = vld [vmem:[%s2055 + $0x38] sm:$0xf]
                  %2086 = vst [vmem:[%s2056 + $0x38] sm:$0xf] %v2085
                  %v2087 = vld [vmem:[%s2055 + $0x3c] sm:$0xf]
                  %2088 = vst [vmem:[%s2056 + $0x3c] sm:$0xf] %v2087
                  %v2089 = vld [vmem:[%s2055 + $0x40] sm:$0xf]
                  %2090 = vst [vmem:[%s2056 + $0x40] sm:$0xf] %v2089
                  %v2091 = vld [vmem:[%s2055 + $0x44] sm:$0xf]
                  %2092 = vst [vmem:[%s2056 + $0x44] sm:$0xf] %v2091
                  %v2093 = vld [vmem:[%s2055 + $0x48] sm:$0xf]
                  %2094 = vst [vmem:[%s2056 + $0x48] sm:$0xf] %v2093
                  %v2095 = vld [vmem:[%s2055 + $0x4c] sm:$0xf]
                  %2096 = vst [vmem:[%s2056 + $0x4c] sm:$0xf] %v2095
                  %v2097 = vld [vmem:[%s2055 + $0x50] sm:$0xf]
                  %2098 = vst [vmem:[%s2056 + $0x50] sm:$0xf] %v2097
                  %v2099 = vld [vmem:[%s2055 + $0x54] sm:$0xf]
                  %2100 = vst [vmem:[%s2056 + $0x54] sm:$0xf] %v2099
                  %v2101 = vld [vmem:[%s2055 + $0x58] sm:$0xf]
                  %2102 = vst [vmem:[%s2056 + $0x58] sm:$0xf] %v2101
                  %v2103 = vld [vmem:[%s2055 + $0x5c] sm:$0xf]
                  %2104 = vst [vmem:[%s2056 + $0x5c] sm:$0xf] %v2103
                  %v2105 = vld [vmem:[%s2055 + $0x60] sm:$0xf]
                  %2106 = vst [vmem:[%s2056 + $0x60] sm:$0xf] %v2105
                  %v2107 = vld [vmem:[%s2055 + $0x64] sm:$0xf]
                  %2108 = vst [vmem:[%s2056 + $0x64] sm:$0xf] %v2107
                  %v2109 = vld [vmem:[%s2055 + $0x68] sm:$0xf]
                  %2110 = vst [vmem:[%s2056 + $0x68] sm:$0xf] %v2109
                  %v2111 = vld [vmem:[%s2055 + $0x6c] sm:$0xf]
                  %2112 = vst [vmem:[%s2056 + $0x6c] sm:$0xf] %v2111
                  %v2113 = vld [vmem:[%s2055 + $0x70] sm:$0xf]
                  %2114 = vst [vmem:[%s2056 + $0x70] sm:$0xf] %v2113
                  %v2115 = vld [vmem:[%s2055 + $0x74] sm:$0xf]
                  %2116 = vst [vmem:[%s2056 + $0x74] sm:$0xf] %v2115
                  %v2117 = vld [vmem:[%s2055 + $0x78] sm:$0xf]
                  %2118 = vst [vmem:[%s2056 + $0x78] sm:$0xf] %v2117
                  %v2119 = vld [vmem:[%s2055 + $0x7c] sm:$0xf]
                  %2120 = vst [vmem:[%s2056 + $0x7c] sm:$0xf] %v2119
                  %v2121 = vld [vmem:[%s2055 + $0x80] sm:$0xf]
                  %2122 = vst [vmem:[%s2056 + $0x80] sm:$0xf] %v2121
                  %v2123 = vld [vmem:[%s2055 + $0x84] sm:$0xf]
                  %2124 = vst [vmem:[%s2056 + $0x84] sm:$0xf] %v2123
                  %v2125 = vld [vmem:[%s2055 + $0x88] sm:$0xf]
                  %2126 = vst [vmem:[%s2056 + $0x88] sm:$0xf] %v2125
                  %v2127 = vld [vmem:[%s2055 + $0x8c] sm:$0xf]
                  %2128 = vst [vmem:[%s2056 + $0x8c] sm:$0xf] %v2127
                  %v2129 = vld [vmem:[%s2055 + $0x90] sm:$0xf]
                  %2130 = vst [vmem:[%s2056 + $0x90] sm:$0xf] %v2129
                  %v2131 = vld [vmem:[%s2055 + $0x94] sm:$0xf]
                  %2132 = vst [vmem:[%s2056 + $0x94] sm:$0xf] %v2131
                  %v2133 = vld [vmem:[%s2055 + $0x98] sm:$0xf]
                  %2134 = vst [vmem:[%s2056 + $0x98] sm:$0xf] %v2133
                  %v2135 = vld [vmem:[%s2055 + $0x9c] sm:$0xf]
                  %2136 = vst [vmem:[%s2056 + $0x9c] sm:$0xf] %v2135
                  %v2137 = vld [vmem:[%s2055 + $0xa0] sm:$0xf]
                  %2138 = vst [vmem:[%s2056 + $0xa0] sm:$0xf] %v2137
                  %v2139 = vld [vmem:[%s2055 + $0xa4] sm:$0xf]
                  %2140 = vst [vmem:[%s2056 + $0xa4] sm:$0xf] %v2139
                  %v2141 = vld [vmem:[%s2055 + $0xa8] sm:$0xf]
                  %2142 = vst [vmem:[%s2056 + $0xa8] sm:$0xf] %v2141
                  %v2143 = vld [vmem:[%s2055 + $0xac] sm:$0xf]
                  %2144 = vst [vmem:[%s2056 + $0xac] sm:$0xf] %v2143
                  %v2145 = vld [vmem:[%s2055 + $0xb0] sm:$0xf]
                  %2146 = vst [vmem:[%s2056 + $0xb0] sm:$0xf] %v2145
                  %v2147 = vld [vmem:[%s2055 + $0xb4] sm:$0xf]
                  %2148 = vst [vmem:[%s2056 + $0xb4] sm:$0xf] %v2147
                  %v2149 = vld [vmem:[%s2055 + $0xb8] sm:$0xf]
                  %2150 = vst [vmem:[%s2056 + $0xb8] sm:$0xf] %v2149
                  %v2151 = vld [vmem:[%s2055 + $0xbc] sm:$0xf]
                  %2152 = vst [vmem:[%s2056 + $0xbc] sm:$0xf] %v2151
                  %v2153 = vld [vmem:[%s2055 + $0xc0] sm:$0xf]
                  %2154 = vst [vmem:[%s2056 + $0xc0] sm:$0xf] %v2153
                  %v2155 = vld [vmem:[%s2055 + $0xc4] sm:$0xf]
                  %2156 = vst [vmem:[%s2056 + $0xc4] sm:$0xf] %v2155
                  %v2157 = vld [vmem:[%s2055 + $0xc8] sm:$0xf]
                  %2158 = vst [vmem:[%s2056 + $0xc8] sm:$0xf] %v2157
                  %v2159 = vld [vmem:[%s2055 + $0xcc] sm:$0xf]
                  %2160 = vst [vmem:[%s2056 + $0xcc] sm:$0xf] %v2159
                  %v2161 = vld [vmem:[%s2055 + $0xd0] sm:$0xf]
                  %2162 = vst [vmem:[%s2056 + $0xd0] sm:$0xf] %v2161
                  %v2163 = vld [vmem:[%s2055 + $0xd4] sm:$0xf]
                  %2164 = vst [vmem:[%s2056 + $0xd4] sm:$0xf] %v2163
                  %v2165 = vld [vmem:[%s2055 + $0xd8] sm:$0xf]
                  %2166 = vst [vmem:[%s2056 + $0xd8] sm:$0xf] %v2165
                  %v2167 = vld [vmem:[%s2055 + $0xdc] sm:$0xf]
                  %2168 = vst [vmem:[%s2056 + $0xdc] sm:$0xf] %v2167
                  %v2169 = vld [vmem:[%s2055 + $0xe0] sm:$0xf]
                  %2170 = vst [vmem:[%s2056 + $0xe0] sm:$0xf] %v2169
                  %v2171 = vld [vmem:[%s2055 + $0xe4] sm:$0xf]
                  %2172 = vst [vmem:[%s2056 + $0xe4] sm:$0xf] %v2171
                  %v2173 = vld [vmem:[%s2055 + $0xe8] sm:$0xf]
                  %2174 = vst [vmem:[%s2056 + $0xe8] sm:$0xf] %v2173
                  %v2175 = vld [vmem:[%s2055 + $0xec] sm:$0xf]
                  %2176 = vst [vmem:[%s2056 + $0xec] sm:$0xf] %v2175
                  %v2177 = vld [vmem:[%s2055 + $0xf0] sm:$0xf]
                  %2178 = vst [vmem:[%s2056 + $0xf0] sm:$0xf] %v2177
                  %v2179 = vld [vmem:[%s2055 + $0xf4] sm:$0xf]
                  %2180 = vst [vmem:[%s2056 + $0xf4] sm:$0xf] %v2179
                  %v2181 = vld [vmem:[%s2055 + $0xf8] sm:$0xf]
                  %2182 = vst [vmem:[%s2056 + $0xf8] sm:$0xf] %v2181
                  %v2183 = vld [vmem:[%s2055 + $0xfc] sm:$0xf]
                  %2184 = vst [vmem:[%s2056 + $0xfc] sm:$0xf] %v2183
                  %s2185 = sadd.s32 1, %s2054
                  %p2186 = scmp.ge.s32.totalorder %s2185, %s2047
                  %s2187 = scalar_select %p2186, 0, %s2185
                  %s2188 = smul.u32 %s2187, 256
                  %s2189 = smul.u32 %s2187, 256
                  %s2190 = scalar_lea.vmem %s1844, %s2188 [#allocation2]
                  %s2191 = scalar_lea.vmem %s1865, %s2189
                $region75: #{tpu_custom_call.1} parent=69 // loop_footer
                  %s2051 = sadd.s32 %s2049, 1
                $region76: #{tpu_custom_call.1} parent=69 // loop_footer_branch
                  %2048 = sbr.rel target = $region72
                $region77: #{tpu_custom_call.1} parent=69 // loop_exit
                  _
                %s2192 = sshrl.u32 %s1859, 6
                %s2193 = sand.u32 %s1859, 63
                %s2194 = smul.u32 %s2192, 64
                %s2195 = smul.u32 4, %s2194
                %s2196 = scalar_lea.vmem %s1844, %s2195 [#allocation2]
                %s2197 = smul.u32 4, %s2194
                %s2198 = scalar_lea.vmem %s1865, %s2197
                // While loop
                $region78: #{tpu_custom_call.1} parent=69 // loop_pre_header
                  _
                $region79: #{tpu_custom_call.1} parent=69 // loop_header
                  %s2200 = sphi 0, %s2202
                  %p2201 = scmp.ge.s32.totalorder %s2200, %s2193
                  %s2205 = sphi 0, %s2212
                  %s2206 = sphi %s2196, %s2215
                  %s2207 = sphi %s2198, %s2216
                $region80: #{tpu_custom_call.1} parent=69 // loop_header_branch
                  %2204 = sbr.rel (%p2201) target = $region84
                $region81: #{tpu_custom_call.1} parent=69 // loop_body
                  %v2208 = vld [vmem:[%s2206] sm:$0xf]
                  %2209 = vst [vmem:[%s2207] sm:$0xf] %v2208
                  %s2210 = sadd.s32 1, %s2205
                  %p2211 = scmp.ge.s32.totalorder %s2210, %s2193
                  %s2212 = scalar_select %p2211, 0, %s2210
                  %s2213 = smul.u32 %s2212, 4
                  %s2214 = smul.u32 %s2212, 4
                  %s2215 = scalar_lea.vmem %s2196, %s2213 [#allocation2]
                  %s2216 = scalar_lea.vmem %s2198, %s2214
                $region82: #{tpu_custom_call.1} parent=69 // loop_footer
                  %s2202 = sadd.s32 %s2200, 1
                $region83: #{tpu_custom_call.1} parent=69 // loop_footer_branch
                  %2199 = sbr.rel target = $region79
                $region84: #{tpu_custom_call.1} parent=69 // loop_exit
                  _
              $region70: #{tpu_custom_call.1} parent=47 // pred_fallthru
                _
            $region48: #{tpu_custom_call.1} parent=43 // pred_fallthru
              _
            // Predicated region
            $region49: #{tpu_custom_call.1} parent=43 // pred_check
              _
            $region50: #{tpu_custom_call.1} parent=43 // pred_check_branch
              %1872 = sbr.rel (0) target = $region52
            $region51: #{tpu_custom_call.1} parent=43 // pred_region
              %s1874 = sshrl.u32 %s1859, 6
              // While loop
              $region53: #{tpu_custom_call.1} parent=51 // loop_pre_header
                _
              $region54: #{tpu_custom_call.1} parent=51 // loop_header
                %s1876 = sphi 0, %s1878
                %p1877 = scmp.ge.s32.totalorder %s1876, %s1874
                %s1881 = sphi 0, %s2014
                %s1882 = sphi %s1844, %s2017
                %s1883 = sphi %s1865, %s2018
              $region55: #{tpu_custom_call.1} parent=51 // loop_header_branch
                %1880 = sbr.rel (%p1877) target = $region59
              $region56: #{tpu_custom_call.1} parent=51 // loop_body
                %v1884 = vld [vmem:[%s1882] sm:$0xf]
                %1885 = vst [vmem:[%s1883] sm:$0xf] %v1884
                %v1886 = vld [vmem:[%s1882 + $0x4] sm:$0xf]
                %1887 = vst [vmem:[%s1883 + $0x4] sm:$0xf] %v1886
                %v1888 = vld [vmem:[%s1882 + $0x8] sm:$0xf]
                %1889 = vst [vmem:[%s1883 + $0x8] sm:$0xf] %v1888
                %v1890 = vld [vmem:[%s1882 + $0xc] sm:$0xf]
                %1891 = vst [vmem:[%s1883 + $0xc] sm:$0xf] %v1890
                %v1892 = vld [vmem:[%s1882 + $0x10] sm:$0xf]
                %1893 = vst [vmem:[%s1883 + $0x10] sm:$0xf] %v1892
                %v1894 = vld [vmem:[%s1882 + $0x14] sm:$0xf]
                %1895 = vst [vmem:[%s1883 + $0x14] sm:$0xf] %v1894
                %v1896 = vld [vmem:[%s1882 + $0x18] sm:$0xf]
                %1897 = vst [vmem:[%s1883 + $0x18] sm:$0xf] %v1896
                %v1898 = vld [vmem:[%s1882 + $0x1c] sm:$0xf]
                %1899 = vst [vmem:[%s1883 + $0x1c] sm:$0xf] %v1898
                %v1900 = vld [vmem:[%s1882 + $0x20] sm:$0xf]
                %1901 = vst [vmem:[%s1883 + $0x20] sm:$0xf] %v1900
                %v1902 = vld [vmem:[%s1882 + $0x24] sm:$0xf]
                %1903 = vst [vmem:[%s1883 + $0x24] sm:$0xf] %v1902
                %v1904 = vld [vmem:[%s1882 + $0x28] sm:$0xf]
                %1905 = vst [vmem:[%s1883 + $0x28] sm:$0xf] %v1904
                %v1906 = vld [vmem:[%s1882 + $0x2c] sm:$0xf]
                %1907 = vst [vmem:[%s1883 + $0x2c] sm:$0xf] %v1906
                %v1908 = vld [vmem:[%s1882 + $0x30] sm:$0xf]
                %1909 = vst [vmem:[%s1883 + $0x30] sm:$0xf] %v1908
                %v1910 = vld [vmem:[%s1882 + $0x34] sm:$0xf]
                %1911 = vst [vmem:[%s1883 + $0x34] sm:$0xf] %v1910
                %v1912 = vld [vmem:[%s1882 + $0x38] sm:$0xf]
                %1913 = vst [vmem:[%s1883 + $0x38] sm:$0xf] %v1912
                %v1914 = vld [vmem:[%s1882 + $0x3c] sm:$0xf]
                %1915 = vst [vmem:[%s1883 + $0x3c] sm:$0xf] %v1914
                %v1916 = vld [vmem:[%s1882 + $0x40] sm:$0xf]
                %1917 = vst [vmem:[%s1883 + $0x40] sm:$0xf] %v1916
                %v1918 = vld [vmem:[%s1882 + $0x44] sm:$0xf]
                %1919 = vst [vmem:[%s1883 + $0x44] sm:$0xf] %v1918
                %v1920 = vld [vmem:[%s1882 + $0x48] sm:$0xf]
                %1921 = vst [vmem:[%s1883 + $0x48] sm:$0xf] %v1920
                %v1922 = vld [vmem:[%s1882 + $0x4c] sm:$0xf]
                %1923 = vst [vmem:[%s1883 + $0x4c] sm:$0xf] %v1922
                %v1924 = vld [vmem:[%s1882 + $0x50] sm:$0xf]
                %1925 = vst [vmem:[%s1883 + $0x50] sm:$0xf] %v1924
                %v1926 = vld [vmem:[%s1882 + $0x54] sm:$0xf]
                %1927 = vst [vmem:[%s1883 + $0x54] sm:$0xf] %v1926
                %v1928 = vld [vmem:[%s1882 + $0x58] sm:$0xf]
                %1929 = vst [vmem:[%s1883 + $0x58] sm:$0xf] %v1928
                %v1930 = vld [vmem:[%s1882 + $0x5c] sm:$0xf]
                %1931 = vst [vmem:[%s1883 + $0x5c] sm:$0xf] %v1930
                %v1932 = vld [vmem:[%s1882 + $0x60] sm:$0xf]
                %1933 = vst [vmem:[%s1883 + $0x60] sm:$0xf] %v1932
                %v1934 = vld [vmem:[%s1882 + $0x64] sm:$0xf]
                %1935 = vst [vmem:[%s1883 + $0x64] sm:$0xf] %v1934
                %v1936 = vld [vmem:[%s1882 + $0x68] sm:$0xf]
                %1937 = vst [vmem:[%s1883 + $0x68] sm:$0xf] %v1936
                %v1938 = vld [vmem:[%s1882 + $0x6c] sm:$0xf]
                %1939 = vst [vmem:[%s1883 + $0x6c] sm:$0xf] %v1938
                %v1940 = vld [vmem:[%s1882 + $0x70] sm:$0xf]
                %1941 = vst [vmem:[%s1883 + $0x70] sm:$0xf] %v1940
                %v1942 = vld [vmem:[%s1882 + $0x74] sm:$0xf]
                %1943 = vst [vmem:[%s1883 + $0x74] sm:$0xf] %v1942
                %v1944 = vld [vmem:[%s1882 + $0x78] sm:$0xf]
                %1945 = vst [vmem:[%s1883 + $0x78] sm:$0xf] %v1944
                %v1946 = vld [vmem:[%s1882 + $0x7c] sm:$0xf]
                %1947 = vst [vmem:[%s1883 + $0x7c] sm:$0xf] %v1946
                %v1948 = vld [vmem:[%s1882 + $0x80] sm:$0xf]
                %1949 = vst [vmem:[%s1883 + $0x80] sm:$0xf] %v1948
                %v1950 = vld [vmem:[%s1882 + $0x84] sm:$0xf]
                %1951 = vst [vmem:[%s1883 + $0x84] sm:$0xf] %v1950
                %v1952 = vld [vmem:[%s1882 + $0x88] sm:$0xf]
                %1953 = vst [vmem:[%s1883 + $0x88] sm:$0xf] %v1952
                %v1954 = vld [vmem:[%s1882 + $0x8c] sm:$0xf]
                %1955 = vst [vmem:[%s1883 + $0x8c] sm:$0xf] %v1954
                %v1956 = vld [vmem:[%s1882 + $0x90] sm:$0xf]
                %1957 = vst [vmem:[%s1883 + $0x90] sm:$0xf] %v1956
                %v1958 = vld [vmem:[%s1882 + $0x94] sm:$0xf]
                %1959 = vst [vmem:[%s1883 + $0x94] sm:$0xf] %v1958
                %v1960 = vld [vmem:[%s1882 + $0x98] sm:$0xf]
                %1961 = vst [vmem:[%s1883 + $0x98] sm:$0xf] %v1960
                %v1962 = vld [vmem:[%s1882 + $0x9c] sm:$0xf]
                %1963 = vst [vmem:[%s1883 + $0x9c] sm:$0xf] %v1962
                %v1964 = vld [vmem:[%s1882 + $0xa0] sm:$0xf]
                %1965 = vst [vmem:[%s1883 + $0xa0] sm:$0xf] %v1964
                %v1966 = vld [vmem:[%s1882 + $0xa4] sm:$0xf]
                %1967 = vst [vmem:[%s1883 + $0xa4] sm:$0xf] %v1966
                %v1968 = vld [vmem:[%s1882 + $0xa8] sm:$0xf]
                %1969 = vst [vmem:[%s1883 + $0xa8] sm:$0xf] %v1968
                %v1970 = vld [vmem:[%s1882 + $0xac] sm:$0xf]
                %1971 = vst [vmem:[%s1883 + $0xac] sm:$0xf] %v1970
                %v1972 = vld [vmem:[%s1882 + $0xb0] sm:$0xf]
                %1973 = vst [vmem:[%s1883 + $0xb0] sm:$0xf] %v1972
                %v1974 = vld [vmem:[%s1882 + $0xb4] sm:$0xf]
                %1975 = vst [vmem:[%s1883 + $0xb4] sm:$0xf] %v1974
                %v1976 = vld [vmem:[%s1882 + $0xb8] sm:$0xf]
                %1977 = vst [vmem:[%s1883 + $0xb8] sm:$0xf] %v1976
                %v1978 = vld [vmem:[%s1882 + $0xbc] sm:$0xf]
                %1979 = vst [vmem:[%s1883 + $0xbc] sm:$0xf] %v1978
                %v1980 = vld [vmem:[%s1882 + $0xc0] sm:$0xf]
                %1981 = vst [vmem:[%s1883 + $0xc0] sm:$0xf] %v1980
                %v1982 = vld [vmem:[%s1882 + $0xc4] sm:$0xf]
                %1983 = vst [vmem:[%s1883 + $0xc4] sm:$0xf] %v1982
                %v1984 = vld [vmem:[%s1882 + $0xc8] sm:$0xf]
                %1985 = vst [vmem:[%s1883 + $0xc8] sm:$0xf] %v1984
                %v1986 = vld [vmem:[%s1882 + $0xcc] sm:$0xf]
                %1987 = vst [vmem:[%s1883 + $0xcc] sm:$0xf] %v1986
                %v1988 = vld [vmem:[%s1882 + $0xd0] sm:$0xf]
                %1989 = vst [vmem:[%s1883 + $0xd0] sm:$0xf] %v1988
                %v1990 = vld [vmem:[%s1882 + $0xd4] sm:$0xf]
                %1991 = vst [vmem:[%s1883 + $0xd4] sm:$0xf] %v1990
                %v1992 = vld [vmem:[%s1882 + $0xd8] sm:$0xf]
                %1993 = vst [vmem:[%s1883 + $0xd8] sm:$0xf] %v1992
                %v1994 = vld [vmem:[%s1882 + $0xdc] sm:$0xf]
                %1995 = vst [vmem:[%s1883 + $0xdc] sm:$0xf] %v1994
                %v1996 = vld [vmem:[%s1882 + $0xe0] sm:$0xf]
                %1997 = vst [vmem:[%s1883 + $0xe0] sm:$0xf] %v1996
                %v1998 = vld [vmem:[%s1882 + $0xe4] sm:$0xf]
                %1999 = vst [vmem:[%s1883 + $0xe4] sm:$0xf] %v1998
                %v2000 = vld [vmem:[%s1882 + $0xe8] sm:$0xf]
                %2001 = vst [vmem:[%s1883 + $0xe8] sm:$0xf] %v2000
                %v2002 = vld [vmem:[%s1882 + $0xec] sm:$0xf]
                %2003 = vst [vmem:[%s1883 + $0xec] sm:$0xf] %v2002
                %v2004 = vld [vmem:[%s1882 + $0xf0] sm:$0xf]
                %2005 = vst [vmem:[%s1883 + $0xf0] sm:$0xf] %v2004
                %v2006 = vld [vmem:[%s1882 + $0xf4] sm:$0xf]
                %2007 = vst [vmem:[%s1883 + $0xf4] sm:$0xf] %v2006
                %v2008 = vld [vmem:[%s1882 + $0xf8] sm:$0xf]
                %2009 = vst [vmem:[%s1883 + $0xf8] sm:$0xf] %v2008
                %v2010 = vld [vmem:[%s1882 + $0xfc] sm:$0xf]
                %2011 = vst [vmem:[%s1883 + $0xfc] sm:$0xf] %v2010
                %s2012 = sadd.s32 1, %s1881
                %p2013 = scmp.ge.s32.totalorder %s2012, %s1874
                %s2014 = scalar_select %p2013, 0, %s2012
                %s2015 = smul.u32 %s2014, 256
                %s2016 = smul.u32 %s2014, 256
                %s2017 = scalar_lea.vmem %s1844, %s2015 [#allocation2]
                %s2018 = scalar_lea.vmem %s1865, %s2016
              $region57: #{tpu_custom_call.1} parent=51 // loop_footer
                %s1878 = sadd.s32 %s1876, 1
              $region58: #{tpu_custom_call.1} parent=51 // loop_footer_branch
                %1875 = sbr.rel target = $region54
              $region59: #{tpu_custom_call.1} parent=51 // loop_exit
                _
              %s2019 = sshrl.u32 %s1859, 6
              %s2020 = sand.u32 %s1859, 63
              %s2021 = smul.u32 %s2019, 64
              %s2022 = smul.u32 4, %s2021
              %s2023 = scalar_lea.vmem %s1844, %s2022 [#allocation2]
              %s2024 = smul.u32 4, %s2021
              %s2025 = scalar_lea.vmem %s1865, %s2024
              // While loop
              $region60: #{tpu_custom_call.1} parent=51 // loop_pre_header
                _
              $region61: #{tpu_custom_call.1} parent=51 // loop_header
                %s2027 = sphi 0, %s2029
                %p2028 = scmp.ge.s32.totalorder %s2027, %s2020
                %s2032 = sphi 0, %s2039
                %s2033 = sphi %s2023, %s2042
                %s2034 = sphi %s2025, %s2043
              $region62: #{tpu_custom_call.1} parent=51 // loop_header_branch
                %2031 = sbr.rel (%p2028) target = $region66
              $region63: #{tpu_custom_call.1} parent=51 // loop_body
                %v2035 = vld [vmem:[%s2033] sm:$0xf]
                %2036 = vst [vmem:[%s2034] sm:$0xf] %v2035
                %s2037 = sadd.s32 1, %s2032
                %p2038 = scmp.ge.s32.totalorder %s2037, %s2020
                %s2039 = scalar_select %p2038, 0, %s2037
                %s2040 = smul.u32 %s2039, 4
                %s2041 = smul.u32 %s2039, 4
                %s2042 = scalar_lea.vmem %s2023, %s2040 [#allocation2]
                %s2043 = scalar_lea.vmem %s2025, %s2041
              $region64: #{tpu_custom_call.1} parent=51 // loop_footer
                %s2029 = sadd.s32 %s2027, 1
              $region65: #{tpu_custom_call.1} parent=51 // loop_footer_branch
                %2026 = sbr.rel target = $region61
              $region66: #{tpu_custom_call.1} parent=51 // loop_exit
                _
            $region52: #{tpu_custom_call.1} parent=43 // pred_fallthru
              _
          $region44: #{tpu_custom_call.1} parent=39 // pred_fallthru
            _
          %2217 = vnop
        $region40: #{tpu_custom_call.1} parent=31 // pred_fallthru
          _
        // Predicated region
        $region85: #{tpu_custom_call.1} parent=31 // pred_check
          %p2218 = pneg %p151
        $region86: #{tpu_custom_call.1} parent=31 // pred_check_branch
          %2220 = sbr.rel (%p2218) target = $region88
        $region87: #{tpu_custom_call.1} parent=31 // pred_region
          %s2222 = ssub.s32 16, 16
          %2223 = vsyncadd %s1846, %s2222
          %s2224 = smul.addr %s27, 16
          %s2225 = scalar_lea.hbm %s4, %s2224
          %s2227 = sshll.u32 %s1848, 4
          %s2228 = int_to_ptr.vmem [resolvable:$true] %s2227
          %2230 = dma.vmem_to_hbm [thread:$0]  %s2228, 16, %s2225, %s1846
        $region88: #{tpu_custom_call.1} parent=31 // pred_fallthru
          _
        // Predicated region
        $region89: #{tpu_custom_call.1} parent=31 // pred_check
          %p2231 = pneg %p177
        $region90: #{tpu_custom_call.1} parent=31 // pred_check_branch
          %2233 = sbr.rel (%p2231) target = $region92
        $region91: #{tpu_custom_call.1} parent=31 // pred_region
          %s2235 = ssub.s32 16, 16
          %2236 = vsyncadd %s1850, %s2235
          %s2237 = smul.addr %s27, 16
          %s2238 = scalar_lea.hbm %s5, %s2237
          %s2240 = sshll.u32 %s1852, 4
          %s2241 = int_to_ptr.vmem [resolvable:$true] %s2240
          %2243 = dma.vmem_to_hbm [thread:$0]  %s2241, 16, %s2238, %s1850
        $region92: #{tpu_custom_call.1} parent=31 // pred_fallthru
          _
      $region32: #{tpu_custom_call.1} parent=5 // pred_fallthru
        _
      %p2244 = scmp.le.s32.totalorder 2, %s18
      // Predicated region
      $region93: #{tpu_custom_call.1} parent=5 // pred_check
        %p2245 = pneg %p2244
      $region94: #{tpu_custom_call.1} parent=5 // pred_check_branch
        %2247 = sbr.rel (%p2245) target = $region96
      $region95: #{tpu_custom_call.1} parent=5 // pred_region
        %s2248 = ssub.s32 %s18, 2
        // Predicated region
        $region97: #{tpu_custom_call.1} parent=95 // pred_check
          %p2249 = pneg %p131
        $region98: #{tpu_custom_call.1} parent=95 // pred_check_branch
          %2251 = sbr.rel (%p2249) target = $region100
        $region99: #{tpu_custom_call.1} parent=95 // pred_region
          %s2252 = sand.u32 %s116, 1
          %s2253 = sand.u32 %s116, 1
          %s2254 = smul.addr %s2253, 256
          %s2255 = scalar_lea.vmem [#allocation2], %s2254
        $region100: #{tpu_custom_call.1} parent=95 // pred_fallthru
          _
        // Predicated region
        $region101: #{tpu_custom_call.1} parent=95 // pred_check
          %p2256 = pneg %p157
        $region102: #{tpu_custom_call.1} parent=95 // pred_check_branch
          %2258 = sbr.rel (%p2256) target = $region104
        $region103: #{tpu_custom_call.1} parent=95 // pred_region
          %s2259 = sand.u32 %s142, 1
          %s2260 = scalar_lea.sflag [#allocation4], %s2259
          %s2261 = sand.u32 %s142, 1
          %s2262 = scalar_lea.vmem [#allocation3], %s2261
          %2263 = dma.done %s2260, 16
        $region104: #{tpu_custom_call.1} parent=95 // pred_fallthru
          _
        // Predicated region
        $region105: #{tpu_custom_call.1} parent=95 // pred_check
          %p2264 = pneg %p183
        $region106: #{tpu_custom_call.1} parent=95 // pred_check_branch
          %2266 = sbr.rel (%p2264) target = $region108
        $region107: #{tpu_custom_call.1} parent=95 // pred_region
          %s2267 = sand.u32 %s168, 1
          %s2268 = scalar_lea.sflag [#allocation6], %s2267
          %s2269 = sand.u32 %s168, 1
          %s2270 = scalar_lea.vmem [#allocation5], %s2269
          %2271 = dma.done %s2268, 16
        $region108: #{tpu_custom_call.1} parent=95 // pred_fallthru
          _
      $region96: #{tpu_custom_call.1} parent=5 // pred_fallthru
        _
    $region6: #{tpu_custom_call.1} parent=1 // loop_footer
      %s22 = sadd.s32 1, %s18
    $region7: #{tpu_custom_call.1} parent=1 // loop_footer_branch
      %17 = sbr.rel target = $region3
    $region8: #{tpu_custom_call.1} parent=1 // loop_exit
      _
    %2272 = vsyncpa [#allocation4], 1
    %s2273 = scalar_lea.sflag [#allocation4], 1
    %2274 = vsyncpa %s2273, 1
    %2275 = vsyncpa [#allocation6], 1
    %s2276 = scalar_lea.sflag [#allocation6], 1
    %2277 = vsyncpa %s2276, 1

</llo_original>
